<compile_context>
chip_gen: v6e
topology: v6e:2x2x1
jax: 0.10.0
libtpu: 0.0.40
codegen_flags: <defaults>
</compile_context>

<pallas_src>
import jax
import jax.numpy as jnp
from jax.experimental import pallas as pl
from jax.experimental.pallas import tpu as pltpu

K1, P1 = 7, 3
K2, P2 = 5, 2
K3, P3 = 3, 1
EPS = 1e-5
PAD_ROWS = 8  # sublane-aligned zero border (>= any conv half-width)


# ----------------------------------------------------------------------------
# shared math (pure jnp -> used verbatim inside the Pallas kernel AND as the XLA
# reference, so kernel and reference follow the identical precision policy)
# ----------------------------------------------------------------------------
def _bn_relu_bf16(z, gamma, beta):
    """Training-mode BatchNorm1d + ReLU.

    Single stats pass (sum + sum-of-squares), gamma/rsqrt/mu/beta folded into a
    per-channel scale/shift; normalization is one fused mul+add+max.  Stats and
    normalization are f32; the stored activation is bf16 (next consumer is a bf16
    MXU matmul anyway).
    """
    inv_n = 1.0 / (z.shape[0] * z.shape[1])
    s = jnp.sum(z, axis=(0, 1), keepdims=True)            # (1,1,C)
    ss = jnp.sum(z * z, axis=(0, 1), keepdims=True)       # (1,1,C)
    mu = s * inv_n
    var = ss * inv_n - mu * mu                            # biased variance
    scale = gamma[None] * jax.lax.rsqrt(var + EPS)        # (1,1,C)
    shift = beta[None] - mu * scale
    return jnp.maximum(z * scale + shift, 0.0).astype(jnp.bfloat16)


def _conv_per_tap(h, w_taps, K, P):
    """'same' conv1d as K accumulated matmuls (no im2col buffer).

    h: (B, L, Cin) bf16.  w_taps: (K, Cin, Cout) bf16.  Returns (B, L, Cout) f32.
    Each tap is a full-depth MXU contraction over Cin; f32 accumulation across taps.
    """
    B, L, Cin = h.shape
    Cout = w_taps.shape[-1]
    zrows = jnp.zeros((B, PAD_ROWS, Cin), jnp.bfloat16)
    hp = jnp.concatenate([zrows, h, zrows], axis=1)        # (B, L+16, Cin) bf16
    z = jnp.zeros((B * L, Cout), jnp.float32)
    for k in range(K):
        s = PAD_ROWS - P + k
        lhs = hp[:, s:s + L, :].reshape(B * L, Cin)
        z = z + jnp.dot(lhs, w_taps[k], preferred_element_type=jnp.float32)
    return z.reshape(B, L, Cout)


def _conv_im2col(h, w_flat, K, P):
    """'same' conv1d as a single fused bf16 im2col matmul (deep MXU contraction).

    h: (B, L, Cin) bf16.  w_flat: (K*Cin, Cout) bf16 (tap-major).  Returns f32.
    """
    B, L, Cin = h.shape
    zrows = jnp.zeros((B, PAD_ROWS, Cin), jnp.bfloat16)
    hp = jnp.concatenate([zrows, h, zrows], axis=1)        # (B, L+16, Cin) bf16
    cols = jnp.concatenate(
        [hp[:, PAD_ROWS - P + k: PAD_ROWS - P + k + L, :] for k in range(K)],
        axis=-1)                                           # (B, L, K*Cin) bf16
    z = jnp.dot(cols.reshape(B * L, K * Cin), w_flat,
                preferred_element_type=jnp.float32)
    return z.reshape(B, L, -1)


def _forward_math(x, w1, g1, be1, w2_flat, g2, be2, w3, g3, be3, wfc, bfc):
    """x: (B, L, C) bf16.  Conv biases are omitted: per-channel constants added before
    training-mode BatchNorm cancel exactly in (z - mu)."""
    # layer 1: conv1d(C->128, k=7, p=3); tiny contraction, per-tap keeps it in-kernel.
    z1 = _conv_per_tap(x, w1, K1, P1)
    h1 = _bn_relu_bf16(z1, g1, be1)
    # layer 2: conv1d(128->256, k=5, p=2); fused bf16 im2col (640-deep contraction).
    z2 = _conv_im2col(h1, w2_flat, K2, P2)
    h2 = _bn_relu_bf16(z2, g2, be2)
    # layer 3: conv1d(256->128, k=3, p=1); per-tap = full 256-deep MXU passes, no cols.
    z3 = _conv_per_tap(h2, w3, K3, P3)
    h3 = _bn_relu_bf16(z3, g3, be3)
    # global average pool over time + FC head (f32 epilogue)
    gap = jnp.mean(h3.astype(jnp.float32), axis=1)          # (B, 128)
    return jnp.dot(gap.astype(jnp.bfloat16), wfc,
                   preferred_element_type=jnp.float32) + bfc


# ----------------------------------------------------------------------------
# Pallas kernel
# ----------------------------------------------------------------------------
def ladder_fcn_kernel(x_ref,
                      w1_ref, g1_ref, be1_ref,
                      w2_ref, g2_ref, be2_ref,
                      w3_ref, g3_ref, be3_ref,
                      wfc_ref, bfc_ref,
                      out_ref):
    out_ref[...] = _forward_math(
        x_ref[...],
        w1_ref[...], g1_ref[...], be1_ref[...],
        w2_ref[...], g2_ref[...], be2_ref[...],
        w3_ref[...], g3_ref[...], be3_ref[...],
        wfc_ref[...], bfc_ref[...]).astype(out_ref.dtype)


# ----------------------------------------------------------------------------
# wrapper / glue
# ----------------------------------------------------------------------------
def prep_args(x_ncl, params):
    """Input prep shared by kernel wrapper and reference (identical precision path)."""
    x = jnp.transpose(x_ncl, (0, 2, 1)).astype(jnp.bfloat16)        # (B, L, C) bf16
    return (x,
            params["w1"].astype(jnp.bfloat16), params["g1"], params["be1"],
            params["w2"].reshape(K2 * 128, 256).astype(jnp.bfloat16),
            params["g2"], params["be2"],
            params["w3"].astype(jnp.bfloat16), params["g3"], params["be3"],
            params["wfc"].astype(jnp.bfloat16), params["bfc"])


def _vmem_limit_bytes(B, L, n_classes):
    """Single-buffered VMEM footprint (lane padding included), capped per generation."""
    BL = B * L
    Lp = L + 2 * PAD_ROWS
    act = BL * (4 * (128 + 256 + 128)          # z1/z2/z3 f32
                + 2 * (128 + 256 + 128)        # h1/h2/h3 bf16
                + 2 * K2 * 128)                # conv2 im2col cols bf16
    padded = B * Lp * 2 * (128 + 128 + 256)    # xp (C lane-padded to 128), h1p, h2p bf16
    weights = 2 * (K1 * 128 * 128 + K2 * 128 * 256 + K3 * 256 * 128
                   + 128 * max(n_classes, 128))
    footprint = act + padded + weights + (4 << 20)   # + compiler scratch headroom
    try:
        cap = pltpu.get_tpu_info().vmem_capacity_bytes
    except Exception:
        cap = 64 << 20                                # conservative (v7x per-TC)
    return int(min(max(footprint, 16 << 20), int(0.85 * cap)))


def ladder_fcn_forward(x_ncl, params):
    """x_ncl: (B, C, L) float32 (PyTorch NCL). Returns logits (B, n_classes) float32."""
    B, C, L = x_ncl.shape
    n_classes = params["wfc"].shape[1]
    args = prep_args(x_ncl, params)

    vmem = lambda: pl.BlockSpec(memory_space=pltpu.MemorySpace.VMEM)
    return pl.pallas_call(
        ladder_fcn_kernel,
        out_shape=jax.ShapeDtypeStruct((B, n_classes), jnp.float32),
        in_specs=[vmem() for _ in args],
        out_specs=vmem(),
        compiler_params=pltpu.CompilerParams(
            vmem_limit_bytes=_vmem_limit_bytes(B, L, n_classes)),
    )(*args)


# ----------------------------------------------------------------------------
# parameters (PyTorch default init) and pure-JAX reference
# ----------------------------------------------------------------------------
def init_params(key, channels, n_classes):
    ks = jax.random.split(key, 8)

    def u(k, shape, fan_in):
        bound = 1.0 / jnp.sqrt(jnp.float32(fan_in))
        return jax.random.uniform(k, shape, jnp.float32, -bound, bound)

    return dict(
        # conv weights stored tap-major (K, Cin, Cout) = transpose of PyTorch (Cout, Cin, K)
        w1=u(ks[0], (K1, channels, 128), channels * K1),
        b1=u(ks[1], (1, 128), channels * K1),     # unused: cancels under training-mode BN
        g1=jnp.ones((1, 128), jnp.float32), be1=jnp.zeros((1, 128), jnp.float32),
        w2=u(ks[2], (K2, 128, 256), 128 * K2),
        b2=u(ks[3], (1, 256), 128 * K2),          # unused: cancels under training-mode BN
        g2=jnp.ones((1, 256), jnp.float32), be2=jnp.zeros((1, 256), jnp.float32),
        w3=u(ks[4], (K3, 256, 128), 256 * K3),
        b3=u(ks[5], (1, 128), 256 * K3),          # unused: cancels under training-mode BN
        g3=jnp.ones((1, 128), jnp.float32), be3=jnp.zeros((1, 128), jnp.float32),
        wfc=u(ks[6], (128, n_classes), 128),
        bfc=u(ks[7], (1, n_classes), 128),
    )


def ladder_fcn_reference(x_ncl, params):
    """Pure-JAX (XLA) reference with identical math & precision policy."""
    return _forward_math(*prep_args(x_ncl, params))


if __name__ == "__main__":
    B, C, L, N_CLASSES = 2, 4, 16, 5
    key = jax.random.PRNGKey(0)
    kx, kp = jax.random.split(key)
    x = jax.random.normal(kx, (B, C, L), jnp.float32)   # PyTorch NCL input
    params = init_params(kp, C, N_CLASSES)

    out = ladder_fcn_forward(x, params)
    out = jax.block_until_ready(out)

    ref = ladder_fcn_reference(x, params)
    assert out.shape == (B, N_CLASSES)
    assert jnp.allclose(out, ref, rtol=5e-2, atol=5e-2), (out, ref)
    print("KERNEL_OK")
</pallas_src>

<mosaic_0001>
module attributes {stable_mosaic.version = 11 : i64} {
  func.func @ladder_fcn_kernel(%arg0: memref<2x16x4xbf16, #tpu.memory_space<vmem>>, %arg1: memref<7x4x128xbf16, #tpu.memory_space<vmem>>, %arg2: memref<1x128xf32, #tpu.memory_space<vmem>>, %arg3: memref<1x128xf32, #tpu.memory_space<vmem>>, %arg4: memref<640x256xbf16, #tpu.memory_space<vmem>>, %arg5: memref<1x256xf32, #tpu.memory_space<vmem>>, %arg6: memref<1x256xf32, #tpu.memory_space<vmem>>, %arg7: memref<3x256x128xbf16, #tpu.memory_space<vmem>>, %arg8: memref<1x128xf32, #tpu.memory_space<vmem>>, %arg9: memref<1x128xf32, #tpu.memory_space<vmem>>, %arg10: memref<128x5xbf16, #tpu.memory_space<vmem>>, %arg11: memref<1x5xf32, #tpu.memory_space<vmem>>, %arg12: memref<2x5xf32, #tpu.memory_space<vmem>>) attributes {dimension_semantics = [], scalar_prefetch = 0 : i64, scratch_operands = 0 : i64, tpu.core_type = #tpu.core_type<tc>} {
    %c0 = arith.constant 0 : index
    %c0_0 = arith.constant 0 : index
    %c0_1 = arith.constant 0 : index
    %0 = vector.load %arg0[%c0, %c0_0, %c0_1] : memref<2x16x4xbf16, #tpu.memory_space<vmem>>, vector<2x16x4xbf16>
    %c0_2 = arith.constant 0 : index
    %c0_3 = arith.constant 0 : index
    %c0_4 = arith.constant 0 : index
    %1 = vector.load %arg1[%c0_2, %c0_3, %c0_4] : memref<7x4x128xbf16, #tpu.memory_space<vmem>>, vector<7x4x128xbf16>
    %c0_5 = arith.constant 0 : index
    %c0_6 = arith.constant 0 : index
    %2 = vector.load %arg2[%c0_5, %c0_6] : memref<1x128xf32, #tpu.memory_space<vmem>>, vector<1x128xf32>
    %c0_7 = arith.constant 0 : index
    %c0_8 = arith.constant 0 : index
    %3 = vector.load %arg3[%c0_7, %c0_8] : memref<1x128xf32, #tpu.memory_space<vmem>>, vector<1x128xf32>
    %c0_9 = arith.constant 0 : index
    %c0_10 = arith.constant 0 : index
    %4 = vector.load %arg4[%c0_9, %c0_10] : memref<640x256xbf16, #tpu.memory_space<vmem>>, vector<640x256xbf16>
    %c0_11 = arith.constant 0 : index
    %c0_12 = arith.constant 0 : index
    %5 = vector.load %arg5[%c0_11, %c0_12] : memref<1x256xf32, #tpu.memory_space<vmem>>, vector<1x256xf32>
    %c0_13 = arith.constant 0 : index
    %c0_14 = arith.constant 0 : index
    %6 = vector.load %arg6[%c0_13, %c0_14] : memref<1x256xf32, #tpu.memory_space<vmem>>, vector<1x256xf32>
    %c0_15 = arith.constant 0 : index
    %c0_16 = arith.constant 0 : index
    %c0_17 = arith.constant 0 : index
    %7 = vector.load %arg7[%c0_15, %c0_16, %c0_17] : memref<3x256x128xbf16, #tpu.memory_space<vmem>>, vector<3x256x128xbf16>
    %c0_18 = arith.constant 0 : index
    %c0_19 = arith.constant 0 : index
    %8 = vector.load %arg8[%c0_18, %c0_19] : memref<1x128xf32, #tpu.memory_space<vmem>>, vector<1x128xf32>
    %c0_20 = arith.constant 0 : index
    %c0_21 = arith.constant 0 : index
    %9 = vector.load %arg9[%c0_20, %c0_21] : memref<1x128xf32, #tpu.memory_space<vmem>>, vector<1x128xf32>
    %c0_22 = arith.constant 0 : index
    %c0_23 = arith.constant 0 : index
    %10 = vector.load %arg10[%c0_22, %c0_23] : memref<128x5xbf16, #tpu.memory_space<vmem>>, vector<128x5xbf16>
    %c0_24 = arith.constant 0 : index
    %c0_25 = arith.constant 0 : index
    %11 = vector.load %arg11[%c0_24, %c0_25] : memref<1x5xf32, #tpu.memory_space<vmem>>, vector<1x5xf32>
    %cst = arith.constant 0.000000e+00 : bf16
    %12 = vector.broadcast %cst : bf16 to vector<2x8x4xbf16>
    %13 = tpu.concatenate %12, %0, %12 in 1 : vector<2x8x4xbf16>, vector<2x16x4xbf16>, vector<2x8x4xbf16> -> vector<2x32x4xbf16>
    %cst_26 = arith.constant 0.000000e+00 : f32
    %14 = vector.broadcast %cst_26 : f32 to vector<32x128xf32>
    %15 = vector.extract_strided_slice %13 {offsets = [0, 5, 0], sizes = [2, 16, 4], strides = [1, 1, 1]} : vector<2x32x4xbf16> to vector<2x16x4xbf16>
    %16 = vector.shape_cast %15 : vector<2x16x4xbf16> to vector<32x4xbf16>
    %17 = vector.extract_strided_slice %1 {offsets = [0, 0, 0], sizes = [1, 4, 128], strides = [1, 1, 1]} : vector<7x4x128xbf16> to vector<1x4x128xbf16>
    %18 = vector.shape_cast %17 : vector<1x4x128xbf16> to vector<4x128xbf16>
    %cst_27 = arith.constant dense<0.000000e+00> : vector<32x128xf32>
    %19 = tpu.matmul %16, %18, %cst_27 {dimension_numbers = #tpu.dot_dimension_numbers<[1], [0], [0], [1], [0, 0, 1, 1], [], []>} : vector<32x4xbf16>, vector<4x128xbf16>, vector<32x128xf32> -> vector<32x128xf32>
    %20 = arith.addf %14, %19 : vector<32x128xf32>
    %21 = vector.extract_strided_slice %13 {offsets = [0, 6, 0], sizes = [2, 16, 4], strides = [1, 1, 1]} : vector<2x32x4xbf16> to vector<2x16x4xbf16>
    %22 = vector.shape_cast %21 : vector<2x16x4xbf16> to vector<32x4xbf16>
    %23 = vector.extract_strided_slice %1 {offsets = [1, 0, 0], sizes = [1, 4, 128], strides = [1, 1, 1]} : vector<7x4x128xbf16> to vector<1x4x128xbf16>
    %24 = vector.shape_cast %23 : vector<1x4x128xbf16> to vector<4x128xbf16>
    %cst_28 = arith.constant dense<0.000000e+00> : vector<32x128xf32>
    %25 = tpu.matmul %22, %24, %cst_28 {dimension_numbers = #tpu.dot_dimension_numbers<[1], [0], [0], [1], [0, 0, 1, 1], [], []>} : vector<32x4xbf16>, vector<4x128xbf16>, vector<32x128xf32> -> vector<32x128xf32>
    %26 = arith.addf %20, %25 : vector<32x128xf32>
    %27 = vector.extract_strided_slice %13 {offsets = [0, 7, 0], sizes = [2, 16, 4], strides = [1, 1, 1]} : vector<2x32x4xbf16> to vector<2x16x4xbf16>
    %28 = vector.shape_cast %27 : vector<2x16x4xbf16> to vector<32x4xbf16>
    %29 = vector.extract_strided_slice %1 {offsets = [2, 0, 0], sizes = [1, 4, 128], strides = [1, 1, 1]} : vector<7x4x128xbf16> to vector<1x4x128xbf16>
    %30 = vector.shape_cast %29 : vector<1x4x128xbf16> to vector<4x128xbf16>
    %cst_29 = arith.constant dense<0.000000e+00> : vector<32x128xf32>
    %31 = tpu.matmul %28, %30, %cst_29 {dimension_numbers = #tpu.dot_dimension_numbers<[1], [0], [0], [1], [0, 0, 1, 1], [], []>} : vector<32x4xbf16>, vector<4x128xbf16>, vector<32x128xf32> -> vector<32x128xf32>
    %32 = arith.addf %26, %31 : vector<32x128xf32>
    %33 = vector.extract_strided_slice %13 {offsets = [0, 8, 0], sizes = [2, 16, 4], strides = [1, 1, 1]} : vector<2x32x4xbf16> to vector<2x16x4xbf16>
    %34 = vector.shape_cast %33 : vector<2x16x4xbf16> to vector<32x4xbf16>
    %35 = vector.extract_strided_slice %1 {offsets = [3, 0, 0], sizes = [1, 4, 128], strides = [1, 1, 1]} : vector<7x4x128xbf16> to vector<1x4x128xbf16>
    %36 = vector.shape_cast %35 : vector<1x4x128xbf16> to vector<4x128xbf16>
    %cst_30 = arith.constant dense<0.000000e+00> : vector<32x128xf32>
    %37 = tpu.matmul %34, %36, %cst_30 {dimension_numbers = #tpu.dot_dimension_numbers<[1], [0], [0], [1], [0, 0, 1, 1], [], []>} : vector<32x4xbf16>, vector<4x128xbf16>, vector<32x128xf32> -> vector<32x128xf32>
    %38 = arith.addf %32, %37 : vector<32x128xf32>
    %39 = vector.extract_strided_slice %13 {offsets = [0, 9, 0], sizes = [2, 16, 4], strides = [1, 1, 1]} : vector<2x32x4xbf16> to vector<2x16x4xbf16>
    %40 = vector.shape_cast %39 : vector<2x16x4xbf16> to vector<32x4xbf16>
    %41 = vector.extract_strided_slice %1 {offsets = [4, 0, 0], sizes = [1, 4, 128], strides = [1, 1, 1]} : vector<7x4x128xbf16> to vector<1x4x128xbf16>
    %42 = vector.shape_cast %41 : vector<1x4x128xbf16> to vector<4x128xbf16>
    %cst_31 = arith.constant dense<0.000000e+00> : vector<32x128xf32>
    %43 = tpu.matmul %40, %42, %cst_31 {dimension_numbers = #tpu.dot_dimension_numbers<[1], [0], [0], [1], [0, 0, 1, 1], [], []>} : vector<32x4xbf16>, vector<4x128xbf16>, vector<32x128xf32> -> vector<32x128xf32>
    %44 = arith.addf %38, %43 : vector<32x128xf32>
    %45 = vector.extract_strided_slice %13 {offsets = [0, 10, 0], sizes = [2, 16, 4], strides = [1, 1, 1]} : vector<2x32x4xbf16> to vector<2x16x4xbf16>
    %46 = vector.shape_cast %45 : vector<2x16x4xbf16> to vector<32x4xbf16>
    %47 = vector.extract_strided_slice %1 {offsets = [5, 0, 0], sizes = [1, 4, 128], strides = [1, 1, 1]} : vector<7x4x128xbf16> to vector<1x4x128xbf16>
    %48 = vector.shape_cast %47 : vector<1x4x128xbf16> to vector<4x128xbf16>
    %cst_32 = arith.constant dense<0.000000e+00> : vector<32x128xf32>
    %49 = tpu.matmul %46, %48, %cst_32 {dimension_numbers = #tpu.dot_dimension_numbers<[1], [0], [0], [1], [0, 0, 1, 1], [], []>} : vector<32x4xbf16>, vector<4x128xbf16>, vector<32x128xf32> -> vector<32x128xf32>
    %50 = arith.addf %44, %49 : vector<32x128xf32>
    %51 = vector.extract_strided_slice %13 {offsets = [0, 11, 0], sizes = [2, 16, 4], strides = [1, 1, 1]} : vector<2x32x4xbf16> to vector<2x16x4xbf16>
    %52 = vector.shape_cast %51 : vector<2x16x4xbf16> to vector<32x4xbf16>
    %53 = vector.extract_strided_slice %1 {offsets = [6, 0, 0], sizes = [1, 4, 128], strides = [1, 1, 1]} : vector<7x4x128xbf16> to vector<1x4x128xbf16>
    %54 = vector.shape_cast %53 : vector<1x4x128xbf16> to vector<4x128xbf16>
    %cst_33 = arith.constant dense<0.000000e+00> : vector<32x128xf32>
    %55 = tpu.matmul %52, %54, %cst_33 {dimension_numbers = #tpu.dot_dimension_numbers<[1], [0], [0], [1], [0, 0, 1, 1], [], []>} : vector<32x4xbf16>, vector<4x128xbf16>, vector<32x128xf32> -> vector<32x128xf32>
    %56 = arith.addf %50, %55 : vector<32x128xf32>
    %57 = vector.shape_cast %56 : vector<32x128xf32> to vector<2x16x128xf32>
    %cst_34 = arith.constant dense<0.000000e+00> : vector<128xf32>
    %58 = vector.multi_reduction <add>, %57, %cst_34 [0, 1] : vector<2x16x128xf32> to vector<128xf32>
    %59 = vector.shape_cast %58 : vector<128xf32> to vector<1x1x128xf32>
    %60 = arith.mulf %57, %57 : vector<2x16x128xf32>
    %cst_35 = arith.constant dense<0.000000e+00> : vector<128xf32>
    %61 = vector.multi_reduction <add>, %60, %cst_35 [0, 1] : vector<2x16x128xf32> to vector<128xf32>
    %62 = vector.shape_cast %61 : vector<128xf32> to vector<1x1x128xf32>
    %cst_36 = arith.constant 3.125000e-02 : f32
    %63 = vector.broadcast %cst_36 : f32 to vector<1x1x128xf32>
    %64 = arith.mulf %59, %63 : vector<1x1x128xf32>
    %cst_37 = arith.constant 3.125000e-02 : f32
    %65 = vector.broadcast %cst_37 : f32 to vector<1x1x128xf32>
    %66 = arith.mulf %62, %65 : vector<1x1x128xf32>
    %67 = arith.mulf %64, %64 : vector<1x1x128xf32>
    %68 = arith.subf %66, %67 : vector<1x1x128xf32>
    %69 = vector.shape_cast %2 : vector<1x128xf32> to vector<1x1x128xf32>
    %cst_38 = arith.constant 9.99999974E-6 : f32
    %70 = vector.broadcast %cst_38 : f32 to vector<1x1x128xf32>
    %71 = arith.addf %68, %70 : vector<1x1x128xf32>
    %72 = math.rsqrt %71 : vector<1x1x128xf32>
    %73 = arith.mulf %69, %72 : vector<1x1x128xf32>
    %74 = vector.shape_cast %3 : vector<1x128xf32> to vector<1x1x128xf32>
    %75 = arith.mulf %64, %73 : vector<1x1x128xf32>
    %76 = arith.subf %74, %75 : vector<1x1x128xf32>
    %77 = vector.broadcast %73 : vector<1x1x128xf32> to vector<2x16x128xf32>
    %78 = arith.mulf %57, %77 : vector<2x16x128xf32>
    %79 = vector.broadcast %76 : vector<1x1x128xf32> to vector<2x16x128xf32>
    %80 = arith.addf %78, %79 : vector<2x16x128xf32>
    %cst_39 = arith.constant 0.000000e+00 : f32
    %81 = vector.broadcast %cst_39 : f32 to vector<2x16x128xf32>
    %82 = arith.maximumf %80, %81 : vector<2x16x128xf32>
    %83 = arith.truncf %82 : vector<2x16x128xf32> to vector<2x16x128xbf16>
    %cst_40 = arith.constant 0.000000e+00 : bf16
    %84 = vector.broadcast %cst_40 : bf16 to vector<2x8x128xbf16>
    %85 = tpu.concatenate %84, %83, %84 in 1 : vector<2x8x128xbf16>, vector<2x16x128xbf16>, vector<2x8x128xbf16> -> vector<2x32x128xbf16>
    %86 = vector.extract_strided_slice %85 {offsets = [0, 6, 0], sizes = [2, 16, 128], strides = [1, 1, 1]} : vector<2x32x128xbf16> to vector<2x16x128xbf16>
    %87 = vector.extract_strided_slice %85 {offsets = [0, 7, 0], sizes = [2, 16, 128], strides = [1, 1, 1]} : vector<2x32x128xbf16> to vector<2x16x128xbf16>
    %88 = vector.extract_strided_slice %85 {offsets = [0, 8, 0], sizes = [2, 16, 128], strides = [1, 1, 1]} : vector<2x32x128xbf16> to vector<2x16x128xbf16>
    %89 = vector.extract_strided_slice %85 {offsets = [0, 9, 0], sizes = [2, 16, 128], strides = [1, 1, 1]} : vector<2x32x128xbf16> to vector<2x16x128xbf16>
    %90 = vector.extract_strided_slice %85 {offsets = [0, 10, 0], sizes = [2, 16, 128], strides = [1, 1, 1]} : vector<2x32x128xbf16> to vector<2x16x128xbf16>
    %91 = tpu.concatenate %86, %87, %88, %89, %90 in 2 : vector<2x16x128xbf16>, vector<2x16x128xbf16>, vector<2x16x128xbf16>, vector<2x16x128xbf16>, vector<2x16x128xbf16> -> vector<2x16x640xbf16>
    %92 = vector.shape_cast %91 : vector<2x16x640xbf16> to vector<32x640xbf16>
    %cst_41 = arith.constant dense<0.000000e+00> : vector<32x256xf32>
    %93 = tpu.matmul %92, %4, %cst_41 {dimension_numbers = #tpu.dot_dimension_numbers<[1], [0], [0], [1], [0, 0, 1, 1], [], []>} : vector<32x640xbf16>, vector<640x256xbf16>, vector<32x256xf32> -> vector<32x256xf32>
    %94 = vector.shape_cast %93 : vector<32x256xf32> to vector<2x16x256xf32>
    %cst_42 = arith.constant dense<0.000000e+00> : vector<256xf32>
    %95 = vector.multi_reduction <add>, %94, %cst_42 [0, 1] : vector<2x16x256xf32> to vector<256xf32>
    %96 = vector.shape_cast %95 : vector<256xf32> to vector<1x1x256xf32>
    %97 = arith.mulf %94, %94 : vector<2x16x256xf32>
    %cst_43 = arith.constant dense<0.000000e+00> : vector<256xf32>
    %98 = vector.multi_reduction <add>, %97, %cst_43 [0, 1] : vector<2x16x256xf32> to vector<256xf32>
    %99 = vector.shape_cast %98 : vector<256xf32> to vector<1x1x256xf32>
    %cst_44 = arith.constant 3.125000e-02 : f32
    %100 = vector.broadcast %cst_44 : f32 to vector<1x1x256xf32>
    %101 = arith.mulf %96, %100 : vector<1x1x256xf32>
    %cst_45 = arith.constant 3.125000e-02 : f32
    %102 = vector.broadcast %cst_45 : f32 to vector<1x1x256xf32>
    %103 = arith.mulf %99, %102 : vector<1x1x256xf32>
    %104 = arith.mulf %101, %101 : vector<1x1x256xf32>
    %105 = arith.subf %103, %104 : vector<1x1x256xf32>
    %106 = vector.shape_cast %5 : vector<1x256xf32> to vector<1x1x256xf32>
    %cst_46 = arith.constant 9.99999974E-6 : f32
    %107 = vector.broadcast %cst_46 : f32 to vector<1x1x256xf32>
    %108 = arith.addf %105, %107 : vector<1x1x256xf32>
    %109 = math.rsqrt %108 : vector<1x1x256xf32>
    %110 = arith.mulf %106, %109 : vector<1x1x256xf32>
    %111 = vector.shape_cast %6 : vector<1x256xf32> to vector<1x1x256xf32>
    %112 = arith.mulf %101, %110 : vector<1x1x256xf32>
    %113 = arith.subf %111, %112 : vector<1x1x256xf32>
    %114 = vector.broadcast %110 : vector<1x1x256xf32> to vector<2x16x256xf32>
    %115 = arith.mulf %94, %114 : vector<2x16x256xf32>
    %116 = vector.broadcast %113 : vector<1x1x256xf32> to vector<2x16x256xf32>
    %117 = arith.addf %115, %116 : vector<2x16x256xf32>
    %cst_47 = arith.constant 0.000000e+00 : f32
    %118 = vector.broadcast %cst_47 : f32 to vector<2x16x256xf32>
    %119 = arith.maximumf %117, %118 : vector<2x16x256xf32>
    %120 = arith.truncf %119 : vector<2x16x256xf32> to vector<2x16x256xbf16>
    %cst_48 = arith.constant 0.000000e+00 : bf16
    %121 = vector.broadcast %cst_48 : bf16 to vector<2x8x256xbf16>
    %122 = tpu.concatenate %121, %120, %121 in 1 : vector<2x8x256xbf16>, vector<2x16x256xbf16>, vector<2x8x256xbf16> -> vector<2x32x256xbf16>
    %cst_49 = arith.constant 0.000000e+00 : f32
    %123 = vector.broadcast %cst_49 : f32 to vector<32x128xf32>
    %124 = vector.extract_strided_slice %122 {offsets = [0, 7, 0], sizes = [2, 16, 256], strides = [1, 1, 1]} : vector<2x32x256xbf16> to vector<2x16x256xbf16>
    %125 = vector.shape_cast %124 : vector<2x16x256xbf16> to vector<32x256xbf16>
    %126 = vector.extract_strided_slice %7 {offsets = [0, 0, 0], sizes = [1, 256, 128], strides = [1, 1, 1]} : vector<3x256x128xbf16> to vector<1x256x128xbf16>
    %127 = vector.shape_cast %126 : vector<1x256x128xbf16> to vector<256x128xbf16>
    %cst_50 = arith.constant dense<0.000000e+00> : vector<32x128xf32>
    %128 = tpu.matmul %125, %127, %cst_50 {dimension_numbers = #tpu.dot_dimension_numbers<[1], [0], [0], [1], [0, 0, 1, 1], [], []>} : vector<32x256xbf16>, vector<256x128xbf16>, vector<32x128xf32> -> vector<32x128xf32>
    %129 = arith.addf %123, %128 : vector<32x128xf32>
    %130 = vector.extract_strided_slice %122 {offsets = [0, 8, 0], sizes = [2, 16, 256], strides = [1, 1, 1]} : vector<2x32x256xbf16> to vector<2x16x256xbf16>
    %131 = vector.shape_cast %130 : vector<2x16x256xbf16> to vector<32x256xbf16>
    %132 = vector.extract_strided_slice %7 {offsets = [1, 0, 0], sizes = [1, 256, 128], strides = [1, 1, 1]} : vector<3x256x128xbf16> to vector<1x256x128xbf16>
    %133 = vector.shape_cast %132 : vector<1x256x128xbf16> to vector<256x128xbf16>
    %cst_51 = arith.constant dense<0.000000e+00> : vector<32x128xf32>
    %134 = tpu.matmul %131, %133, %cst_51 {dimension_numbers = #tpu.dot_dimension_numbers<[1], [0], [0], [1], [0, 0, 1, 1], [], []>} : vector<32x256xbf16>, vector<256x128xbf16>, vector<32x128xf32> -> vector<32x128xf32>
    %135 = arith.addf %129, %134 : vector<32x128xf32>
    %136 = vector.extract_strided_slice %122 {offsets = [0, 9, 0], sizes = [2, 16, 256], strides = [1, 1, 1]} : vector<2x32x256xbf16> to vector<2x16x256xbf16>
    %137 = vector.shape_cast %136 : vector<2x16x256xbf16> to vector<32x256xbf16>
    %138 = vector.extract_strided_slice %7 {offsets = [2, 0, 0], sizes = [1, 256, 128], strides = [1, 1, 1]} : vector<3x256x128xbf16> to vector<1x256x128xbf16>
    %139 = vector.shape_cast %138 : vector<1x256x128xbf16> to vector<256x128xbf16>
    %cst_52 = arith.constant dense<0.000000e+00> : vector<32x128xf32>
    %140 = tpu.matmul %137, %139, %cst_52 {dimension_numbers = #tpu.dot_dimension_numbers<[1], [0], [0], [1], [0, 0, 1, 1], [], []>} : vector<32x256xbf16>, vector<256x128xbf16>, vector<32x128xf32> -> vector<32x128xf32>
    %141 = arith.addf %135, %140 : vector<32x128xf32>
    %142 = vector.shape_cast %141 : vector<32x128xf32> to vector<2x16x128xf32>
    %cst_53 = arith.constant dense<0.000000e+00> : vector<128xf32>
    %143 = vector.multi_reduction <add>, %142, %cst_53 [0, 1] : vector<2x16x128xf32> to vector<128xf32>
    %144 = vector.shape_cast %143 : vector<128xf32> to vector<1x1x128xf32>
    %145 = arith.mulf %142, %142 : vector<2x16x128xf32>
    %cst_54 = arith.constant dense<0.000000e+00> : vector<128xf32>
    %146 = vector.multi_reduction <add>, %145, %cst_54 [0, 1] : vector<2x16x128xf32> to vector<128xf32>
    %147 = vector.shape_cast %146 : vector<128xf32> to vector<1x1x128xf32>
    %cst_55 = arith.constant 3.125000e-02 : f32
    %148 = vector.broadcast %cst_55 : f32 to vector<1x1x128xf32>
    %149 = arith.mulf %144, %148 : vector<1x1x128xf32>
    %cst_56 = arith.constant 3.125000e-02 : f32
    %150 = vector.broadcast %cst_56 : f32 to vector<1x1x128xf32>
    %151 = arith.mulf %147, %150 : vector<1x1x128xf32>
    %152 = arith.mulf %149, %149 : vector<1x1x128xf32>
    %153 = arith.subf %151, %152 : vector<1x1x128xf32>
    %154 = vector.shape_cast %8 : vector<1x128xf32> to vector<1x1x128xf32>
    %cst_57 = arith.constant 9.99999974E-6 : f32
    %155 = vector.broadcast %cst_57 : f32 to vector<1x1x128xf32>
    %156 = arith.addf %153, %155 : vector<1x1x128xf32>
    %157 = math.rsqrt %156 : vector<1x1x128xf32>
    %158 = arith.mulf %154, %157 : vector<1x1x128xf32>
    %159 = vector.shape_cast %9 : vector<1x128xf32> to vector<1x1x128xf32>
    %160 = arith.mulf %149, %158 : vector<1x1x128xf32>
    %161 = arith.subf %159, %160 : vector<1x1x128xf32>
    %162 = vector.broadcast %158 : vector<1x1x128xf32> to vector<2x16x128xf32>
    %163 = arith.mulf %142, %162 : vector<2x16x128xf32>
    %164 = vector.broadcast %161 : vector<1x1x128xf32> to vector<2x16x128xf32>
    %165 = arith.addf %163, %164 : vector<2x16x128xf32>
    %cst_58 = arith.constant 0.000000e+00 : f32
    %166 = vector.broadcast %cst_58 : f32 to vector<2x16x128xf32>
    %167 = arith.maximumf %165, %166 : vector<2x16x128xf32>
    %168 = arith.truncf %167 : vector<2x16x128xf32> to vector<2x16x128xbf16>
    %169 = arith.extf %168 : vector<2x16x128xbf16> to vector<2x16x128xf32>
    %cst_59 = arith.constant dense<0.000000e+00> : vector<2x128xf32>
    %170 = vector.multi_reduction <add>, %169, %cst_59 [1] : vector<2x16x128xf32> to vector<2x128xf32>
    %cst_60 = arith.constant 1.600000e+01 : f32
    %171 = vector.broadcast %cst_60 : f32 to vector<2x128xf32>
    %172 = arith.divf %170, %171 : vector<2x128xf32>
    %173 = arith.truncf %172 : vector<2x128xf32> to vector<2x128xbf16>
    %cst_61 = arith.constant dense<0.000000e+00> : vector<2x5xf32>
    %174 = tpu.matmul %173, %10, %cst_61 {dimension_numbers = #tpu.dot_dimension_numbers<[1], [0], [0], [1], [0, 0, 1, 1], [], []>} : vector<2x128xbf16>, vector<128x5xbf16>, vector<2x5xf32> -> vector<2x5xf32>
    %175 = vector.broadcast %11 : vector<1x5xf32> to vector<2x5xf32>
    %176 = arith.addf %174, %175 : vector<2x5xf32>
    %c0_62 = arith.constant 0 : index
    %c0_63 = arith.constant 0 : index
    %177 = vector.load %arg12[%c0_62, %c0_63] : memref<2x5xf32, #tpu.memory_space<vmem>>, vector<2x5xf32>
    tpu.vector_store %arg12[%c0_62, %c0_63], %176 {strides = array<i32>} : memref<2x5xf32, #tpu.memory_space<vmem>>, vector<2x5xf32>,
    return
  }
}

</mosaic_0001>

<llo_original>
// kernel: tpu_custom_call.1
$region0: #{tpu_custom_call.1}
  #allocation0 [shape = 'u32[]', space=smem, size = 0x4, offset = 0x4, fixed_abs, tag = 'smem constant byte address 0x4 - core index']
  #allocation1 [shape = 'u32[144,128]{1,0:T(1,128)}', space=vmem, size = 0x12000, scoped, tag = 'internal scratch']
  %s0 = inlined_call_operand.vmem [shape: bf16[2,16,4], index: 0, kind: input, shape index: {}]
  %s1 = inlined_call_operand.vmem [shape: bf16[7,4,128], index: 1, kind: input, shape index: {}]
  %s2 = inlined_call_operand.vmem [shape: f32[1,128], index: 2, kind: input, shape index: {}]
  %s3 = inlined_call_operand.vmem [shape: f32[1,128], index: 3, kind: input, shape index: {}]
  %s4 = inlined_call_operand.hbm [shape: bf16[640,256], index: 4, kind: input, shape index: {}]
  %s5 = inlined_call_operand.vmem [shape: f32[1,256], index: 5, kind: input, shape index: {}]
  %s6 = inlined_call_operand.vmem [shape: f32[1,256], index: 6, kind: input, shape index: {}]
  %s7 = inlined_call_operand.hbm [shape: bf16[3,256,128], index: 7, kind: input, shape index: {}]
  %s8 = inlined_call_operand.vmem [shape: f32[1,128], index: 8, kind: input, shape index: {}]
  %s9 = inlined_call_operand.vmem [shape: f32[1,128], index: 9, kind: input, shape index: {}]
  %s10 = inlined_call_operand.vmem [shape: bf16[128,5], index: 10, kind: input, shape index: {}]
  %s11 = inlined_call_operand.vmem [shape: f32[1,5], index: 11, kind: input, shape index: {}]
  %s12 = inlined_call_operand.hbm [shape: f32[2,5], index: 12, kind: output, shape index: {}]
  %s13 = sld [smem:[#allocation0]]
  $region66: #{tpu_custom_call.1} parent=0
    _
  %s15 = ssub.s32 1, %s13
  %s16 = scalar_select 0, %s15, %s13
  $region1: #{tpu_custom_call.1} parent=0
    #allocation2 [shape = 'u8[327680]{0}', space=vmem, size = 0x50000, scoped, tag = 'input window, operand 4, single buffered']
    #allocation3 [shape = 's32[1]{0}', space=sflag, size = 0x4, scoped, tag = 'scoped memory for tpu_custom_call.1']
    #allocation4 [shape = 's32[1]{0}', space=sflag, size = 0x4, scoped, tag = 'scoped memory for tpu_custom_call.1']
    #allocation5 [shape = 'u8[196608]{0}', space=vmem, size = 0x30000, scoped, tag = 'input window, operand 7, single buffered']
    #allocation6 [shape = 's32[1]{0}', space=sflag, size = 0x4, scoped, tag = 'scoped memory for tpu_custom_call.1']
    #allocation7 [shape = 'u8[1024]{0}', space=vmem, size = 0x400, scoped, tag = 'output window, operand 0, single buffered']
    %17 = vsyncpa [#allocation3], 0
    %18 = vsyncpa [#allocation6], 0
    %19 = vsyncpa [#allocation4], 0
    // Predicated region
    $region2: #{tpu_custom_call.1} parent=1 // pred_check
      _
    $region3: #{tpu_custom_call.1} parent=1 // pred_check_branch
      %21 = sbr.rel (0) target = $region5
    $region4: #{tpu_custom_call.1} parent=1 // pred_region
      _
    $region5: #{tpu_custom_call.1} parent=1 // pred_fallthru
      _
    // Predicated region
    $region6: #{tpu_custom_call.1} parent=1 // pred_check
      _
    $region7: #{tpu_custom_call.1} parent=1 // pred_check_branch
      %23 = sbr.rel (0) target = $region9
    $region8: #{tpu_custom_call.1} parent=1 // pred_region
      _
    $region9: #{tpu_custom_call.1} parent=1 // pred_fallthru
      _
    // Predicated region
    $region10: #{tpu_custom_call.1} parent=1 // pred_check
      _
    $region11: #{tpu_custom_call.1} parent=1 // pred_check_branch
      %25 = sbr.rel (0) target = $region13
    $region12: #{tpu_custom_call.1} parent=1 // pred_region
      _
    $region13: #{tpu_custom_call.1} parent=1 // pred_fallthru
      _
    // Predicated region
    $region14: #{tpu_custom_call.1} parent=1 // pred_check
      _
    $region15: #{tpu_custom_call.1} parent=1 // pred_check_branch
      %27 = sbr.rel (0) target = $region17
    $region16: #{tpu_custom_call.1} parent=1 // pred_region
      _
    $region17: #{tpu_custom_call.1} parent=1 // pred_fallthru
      _
    // Predicated region
    $region18: #{tpu_custom_call.1} parent=1 // pred_check
      _
    $region19: #{tpu_custom_call.1} parent=1 // pred_check_branch
      %29 = sbr.rel (0) target = $region21
    $region20: #{tpu_custom_call.1} parent=1 // pred_region
      %s31 = ssub.s32 10240, 10240
      %32 = vsyncadd [#allocation3], %s31
      %s33 = sshll.u32 [#allocation2], 4
      %s34 = int_to_ptr.vmem [resolvable:$true] %s33
      %39 = dma.hbm_to_vmem [thread:$0]  %s4, 10240, %s34, [#allocation3], 128, 128, 8
    $region21: #{tpu_custom_call.1} parent=1 // pred_fallthru
      _
    // Predicated region
    $region22: #{tpu_custom_call.1} parent=1 // pred_check
      _
    $region23: #{tpu_custom_call.1} parent=1 // pred_check_branch
      %41 = sbr.rel (0) target = $region25
    $region24: #{tpu_custom_call.1} parent=1 // pred_region
      _
    $region25: #{tpu_custom_call.1} parent=1 // pred_fallthru
      _
    // Predicated region
    $region26: #{tpu_custom_call.1} parent=1 // pred_check
      _
    $region27: #{tpu_custom_call.1} parent=1 // pred_check_branch
      %43 = sbr.rel (0) target = $region29
    $region28: #{tpu_custom_call.1} parent=1 // pred_region
      _
    $region29: #{tpu_custom_call.1} parent=1 // pred_fallthru
      _
    // Predicated region
    $region30: #{tpu_custom_call.1} parent=1 // pred_check
      _
    $region31: #{tpu_custom_call.1} parent=1 // pred_check_branch
      %45 = sbr.rel (0) target = $region33
    $region32: #{tpu_custom_call.1} parent=1 // pred_region
      %s47 = ssub.s32 6144, 6144
      %48 = vsyncadd [#allocation6], %s47
      %s49 = sshll.u32 [#allocation5], 4
      %s50 = int_to_ptr.vmem [resolvable:$true] %s49
      %55 = dma.hbm_to_vmem [thread:$0]  %s7, 6144, %s50, [#allocation6], 64, 64, 4
    $region33: #{tpu_custom_call.1} parent=1 // pred_fallthru
      _
    // Predicated region
    $region34: #{tpu_custom_call.1} parent=1 // pred_check
      _
    $region35: #{tpu_custom_call.1} parent=1 // pred_check_branch
      %57 = sbr.rel (0) target = $region37
    $region36: #{tpu_custom_call.1} parent=1 // pred_region
      _
    $region37: #{tpu_custom_call.1} parent=1 // pred_fallthru
      _
    // Predicated region
    $region38: #{tpu_custom_call.1} parent=1 // pred_check
      _
    $region39: #{tpu_custom_call.1} parent=1 // pred_check_branch
      %59 = sbr.rel (0) target = $region41
    $region40: #{tpu_custom_call.1} parent=1 // pred_region
      _
    $region41: #{tpu_custom_call.1} parent=1 // pred_fallthru
      _
    // Predicated region
    $region42: #{tpu_custom_call.1} parent=1 // pred_check
      _
    $region43: #{tpu_custom_call.1} parent=1 // pred_check_branch
      %61 = sbr.rel (0) target = $region45
    $region44: #{tpu_custom_call.1} parent=1 // pred_region
      _
    $region45: #{tpu_custom_call.1} parent=1 // pred_fallthru
      _
    // Predicated region
    $region46: #{tpu_custom_call.1} parent=1 // pred_check
      _
    $region47: #{tpu_custom_call.1} parent=1 // pred_check_branch
      %63 = sbr.rel (0) target = $region49
    $region48: #{tpu_custom_call.1} parent=1 // pred_region
      _
    $region49: #{tpu_custom_call.1} parent=1 // pred_fallthru
      _
    // Predicated region
    $region50: #{tpu_custom_call.1} parent=1 // pred_check
      _
    $region51: #{tpu_custom_call.1} parent=1 // pred_check_branch
      %65 = sbr.rel (0) target = $region53
    $region52: #{tpu_custom_call.1} parent=1 // pred_region
      %66 = dma.done [#allocation3], 10240
    $region53: #{tpu_custom_call.1} parent=1 // pred_fallthru
      _
    // Predicated region
    $region54: #{tpu_custom_call.1} parent=1 // pred_check
      _
    $region55: #{tpu_custom_call.1} parent=1 // pred_check_branch
      %68 = sbr.rel (0) target = $region57
    $region56: #{tpu_custom_call.1} parent=1 // pred_region
      %69 = dma.done [#allocation6], 6144
    $region57: #{tpu_custom_call.1} parent=1 // pred_fallthru
      _
    %v71 = vld [vmem:[%s0] sm:$0xf]
    %v72 = vld [vmem:[%s0 + $0x4] sm:$0xf]
    %v73 = vld [vmem:[%s0 + $0x8] sm:$0xf]
    %v74 = vld [vmem:[%s0 + $0xc] sm:$0xf]
    %v75 = vld [vmem:[%s1] sm:$0x3]
    %v76 = vld [vmem:[%s1 + $0x2] sm:$0x3]
    %v77 = vld [vmem:[%s1 + $0x4] sm:$0x3]
    %v78 = vld [vmem:[%s1 + $0x6] sm:$0x3]
    %v79 = vld [vmem:[%s1 + $0x8] sm:$0x3]
    %v80 = vld [vmem:[%s1 + $0xa] sm:$0x3]
    %v81 = vld [vmem:[%s1 + $0xc] sm:$0x3]
    %v82 = vld [vmem:[%s2] sm:$0x1]
    %v83 = vld [vmem:[%s3] sm:$0x1]
    %v84 = vld [vmem:[#allocation2] sm:$0xff]
    %v85 = vld [vmem:[#allocation2 + $0x8] sm:$0xff]
    %v86 = vld [vmem:[#allocation2 + $0x10] sm:$0xff]
    %v87 = vld [vmem:[#allocation2 + $0x18] sm:$0xff]
    %v88 = vld [vmem:[#allocation2 + $0x20] sm:$0xff]
    %v89 = vld [vmem:[#allocation2 + $0x28] sm:$0xff]
    %v90 = vld [vmem:[#allocation2 + $0x30] sm:$0xff]
    %v91 = vld [vmem:[#allocation2 + $0x38] sm:$0xff]
    %v92 = vld [vmem:[#allocation2 + $0x40] sm:$0xff]
    %v93 = vld [vmem:[#allocation2 + $0x48] sm:$0xff]
    %v94 = vld [vmem:[#allocation2 + $0x50] sm:$0xff]
    %v95 = vld [vmem:[#allocation2 + $0x58] sm:$0xff]
    %v96 = vld [vmem:[#allocation2 + $0x60] sm:$0xff]
    %v97 = vld [vmem:[#allocation2 + $0x68] sm:$0xff]
    %v98 = vld [vmem:[#allocation2 + $0x70] sm:$0xff]
    %v99 = vld [vmem:[#allocation2 + $0x78] sm:$0xff]
    %v100 = vld [vmem:[#allocation2 + $0x80] sm:$0xff]
    %v101 = vld [vmem:[#allocation2 + $0x88] sm:$0xff]
    %v102 = vld [vmem:[#allocation2 + $0x90] sm:$0xff]
    %v103 = vld [vmem:[#allocation2 + $0x98] sm:$0xff]
    %v104 = vld [vmem:[#allocation2 + $0xa0] sm:$0xff]
    %v105 = vld [vmem:[#allocation2 + $0xa8] sm:$0xff]
    %v106 = vld [vmem:[#allocation2 + $0xb0] sm:$0xff]
    %v107 = vld [vmem:[#allocation2 + $0xb8] sm:$0xff]
    %v108 = vld [vmem:[#allocation2 + $0xc0] sm:$0xff]
    %v109 = vld [vmem:[#allocation2 + $0xc8] sm:$0xff]
    %v110 = vld [vmem:[#allocation2 + $0xd0] sm:$0xff]
    %v111 = vld [vmem:[#allocation2 + $0xd8] sm:$0xff]
    %v112 = vld [vmem:[#allocation2 + $0xe0] sm:$0xff]
    %v113 = vld [vmem:[#allocation2 + $0xe8] sm:$0xff]
    %v114 = vld [vmem:[#allocation2 + $0xf0] sm:$0xff]
    %v115 = vld [vmem:[#allocation2 + $0xf8] sm:$0xff]
    %v116 = vld [vmem:[#allocation2 + $0x100] sm:$0xff]
    %v117 = vld [vmem:[#allocation2 + $0x108] sm:$0xff]
    %v118 = vld [vmem:[#allocation2 + $0x110] sm:$0xff]
    %v119 = vld [vmem:[#allocation2 + $0x118] sm:$0xff]
    %v120 = vld [vmem:[#allocation2 + $0x120] sm:$0xff]
    %v121 = vld [vmem:[#allocation2 + $0x128] sm:$0xff]
    %v122 = vld [vmem:[#allocation2 + $0x130] sm:$0xff]
    %v123 = vld [vmem:[#allocation2 + $0x138] sm:$0xff]
    %v124 = vld [vmem:[#allocation2 + $0x140] sm:$0xff]
    %v125 = vld [vmem:[#allocation2 + $0x148] sm:$0xff]
    %v126 = vld [vmem:[#allocation2 + $0x150] sm:$0xff]
    %v127 = vld [vmem:[#allocation2 + $0x158] sm:$0xff]
    %v128 = vld [vmem:[#allocation2 + $0x160] sm:$0xff]
    %v129 = vld [vmem:[#allocation2 + $0x168] sm:$0xff]
    %v130 = vld [vmem:[#allocation2 + $0x170] sm:$0xff]
    %v131 = vld [vmem:[#allocation2 + $0x178] sm:$0xff]
    %v132 = vld [vmem:[#allocation2 + $0x180] sm:$0xff]
    %v133 = vld [vmem:[#allocation2 + $0x188] sm:$0xff]
    %v134 = vld [vmem:[#allocation2 + $0x190] sm:$0xff]
    %v135 = vld [vmem:[#allocation2 + $0x198] sm:$0xff]
    %v136 = vld [vmem:[#allocation2 + $0x1a0] sm:$0xff]
    %v137 = vld [vmem:[#allocation2 + $0x1a8] sm:$0xff]
    %v138 = vld [vmem:[#allocation2 + $0x1b0] sm:$0xff]
    %v139 = vld [vmem:[#allocation2 + $0x1b8] sm:$0xff]
    %v140 = vld [vmem:[#allocation2 + $0x1c0] sm:$0xff]
    %v141 = vld [vmem:[#allocation2 + $0x1c8] sm:$0xff]
    %v142 = vld [vmem:[#allocation2 + $0x1d0] sm:$0xff]
    %v143 = vld [vmem:[#allocation2 + $0x1d8] sm:$0xff]
    %v144 = vld [vmem:[#allocation2 + $0x1e0] sm:$0xff]
    %v145 = vld [vmem:[#allocation2 + $0x1e8] sm:$0xff]
    %v146 = vld [vmem:[#allocation2 + $0x1f0] sm:$0xff]
    %v147 = vld [vmem:[#allocation2 + $0x1f8] sm:$0xff]
    %v148 = vld [vmem:[#allocation2 + $0x200] sm:$0xff]
    %v149 = vld [vmem:[#allocation2 + $0x208] sm:$0xff]
    %v150 = vld [vmem:[#allocation2 + $0x210] sm:$0xff]
    %v151 = vld [vmem:[#allocation2 + $0x218] sm:$0xff]
    %v152 = vld [vmem:[#allocation2 + $0x220] sm:$0xff]
    %v153 = vld [vmem:[#allocation2 + $0x228] sm:$0xff]
    %v154 = vld [vmem:[#allocation2 + $0x230] sm:$0xff]
    %v155 = vld [vmem:[#allocation2 + $0x238] sm:$0xff]
    %v156 = vld [vmem:[#allocation2 + $0x240] sm:$0xff]
    %v157 = vld [vmem:[#allocation2 + $0x248] sm:$0xff]
    %v158 = vld [vmem:[#allocation2 + $0x250] sm:$0xff]
    %v159 = vld [vmem:[#allocation2 + $0x258] sm:$0xff]
    %v160 = vld [vmem:[#allocation2 + $0x260] sm:$0xff]
    %v161 = vld [vmem:[#allocation2 + $0x268] sm:$0xff]
    %v162 = vld [vmem:[#allocation2 + $0x270] sm:$0xff]
    %v163 = vld [vmem:[#allocation2 + $0x278] sm:$0xff]
    %v164 = vld [vmem:[%s5] sm:$0x3]
    %v165 = vld [vmem:[%s6] sm:$0x3]
    %v166 = vld [vmem:[#allocation5] sm:$0xf]
    %v167 = vld [vmem:[#allocation5 + $0x4] sm:$0xf]
    %v168 = vld [vmem:[#allocation5 + $0x8] sm:$0xf]
    %v169 = vld [vmem:[#allocation5 + $0xc] sm:$0xf]
    %v170 = vld [vmem:[#allocation5 + $0x10] sm:$0xf]
    %v171 = vld [vmem:[#allocation5 + $0x14] sm:$0xf]
    %v172 = vld [vmem:[#allocation5 + $0x18] sm:$0xf]
    %v173 = vld [vmem:[#allocation5 + $0x1c] sm:$0xf]
    %v174 = vld [vmem:[#allocation5 + $0x20] sm:$0xf]
    %v175 = vld [vmem:[#allocation5 + $0x24] sm:$0xf]
    %v176 = vld [vmem:[#allocation5 + $0x28] sm:$0xf]
    %v177 = vld [vmem:[#allocation5 + $0x2c] sm:$0xf]
    %v178 = vld [vmem:[#allocation5 + $0x30] sm:$0xf]
    %v179 = vld [vmem:[#allocation5 + $0x34] sm:$0xf]
    %v180 = vld [vmem:[#allocation5 + $0x38] sm:$0xf]
    %v181 = vld [vmem:[#allocation5 + $0x3c] sm:$0xf]
    %v182 = vld [vmem:[#allocation5 + $0x40] sm:$0xf]
    %v183 = vld [vmem:[#allocation5 + $0x44] sm:$0xf]
    %v184 = vld [vmem:[#allocation5 + $0x48] sm:$0xf]
    %v185 = vld [vmem:[#allocation5 + $0x4c] sm:$0xf]
    %v186 = vld [vmem:[#allocation5 + $0x50] sm:$0xf]
    %v187 = vld [vmem:[#allocation5 + $0x54] sm:$0xf]
    %v188 = vld [vmem:[#allocation5 + $0x58] sm:$0xf]
    %v189 = vld [vmem:[#allocation5 + $0x5c] sm:$0xf]
    %v190 = vld [vmem:[#allocation5 + $0x60] sm:$0xf]
    %v191 = vld [vmem:[#allocation5 + $0x64] sm:$0xf]
    %v192 = vld [vmem:[#allocation5 + $0x68] sm:$0xf]
    %v193 = vld [vmem:[#allocation5 + $0x6c] sm:$0xf]
    %v194 = vld [vmem:[#allocation5 + $0x70] sm:$0xf]
    %v195 = vld [vmem:[#allocation5 + $0x74] sm:$0xf]
    %v196 = vld [vmem:[#allocation5 + $0x78] sm:$0xf]
    %v197 = vld [vmem:[#allocation5 + $0x7c] sm:$0xf]
    %v198 = vld [vmem:[#allocation5 + $0x80] sm:$0xf]
    %v199 = vld [vmem:[#allocation5 + $0x84] sm:$0xf]
    %v200 = vld [vmem:[#allocation5 + $0x88] sm:$0xf]
    %v201 = vld [vmem:[#allocation5 + $0x8c] sm:$0xf]
    %v202 = vld [vmem:[#allocation5 + $0x90] sm:$0xf]
    %v203 = vld [vmem:[#allocation5 + $0x94] sm:$0xf]
    %v204 = vld [vmem:[#allocation5 + $0x98] sm:$0xf]
    %v205 = vld [vmem:[#allocation5 + $0x9c] sm:$0xf]
    %v206 = vld [vmem:[#allocation5 + $0xa0] sm:$0xf]
    %v207 = vld [vmem:[#allocation5 + $0xa4] sm:$0xf]
    %v208 = vld [vmem:[#allocation5 + $0xa8] sm:$0xf]
    %v209 = vld [vmem:[#allocation5 + $0xac] sm:$0xf]
    %v210 = vld [vmem:[#allocation5 + $0xb0] sm:$0xf]
    %v211 = vld [vmem:[#allocation5 + $0xb4] sm:$0xf]
    %v212 = vld [vmem:[#allocation5 + $0xb8] sm:$0xf]
    %v213 = vld [vmem:[#allocation5 + $0xbc] sm:$0xf]
    %v214 = vld [vmem:[#allocation5 + $0xc0] sm:$0xf]
    %v215 = vld [vmem:[#allocation5 + $0xc4] sm:$0xf]
    %v216 = vld [vmem:[#allocation5 + $0xc8] sm:$0xf]
    %v217 = vld [vmem:[#allocation5 + $0xcc] sm:$0xf]
    %v218 = vld [vmem:[#allocation5 + $0xd0] sm:$0xf]
    %v219 = vld [vmem:[#allocation5 + $0xd4] sm:$0xf]
    %v220 = vld [vmem:[#allocation5 + $0xd8] sm:$0xf]
    %v221 = vld [vmem:[#allocation5 + $0xdc] sm:$0xf]
    %v222 = vld [vmem:[#allocation5 + $0xe0] sm:$0xf]
    %v223 = vld [vmem:[#allocation5 + $0xe4] sm:$0xf]
    %v224 = vld [vmem:[#allocation5 + $0xe8] sm:$0xf]
    %v225 = vld [vmem:[#allocation5 + $0xec] sm:$0xf]
    %v226 = vld [vmem:[#allocation5 + $0xf0] sm:$0xf]
    %v227 = vld [vmem:[#allocation5 + $0xf4] sm:$0xf]
    %v228 = vld [vmem:[#allocation5 + $0xf8] sm:$0xf]
    %v229 = vld [vmem:[#allocation5 + $0xfc] sm:$0xf]
    %v230 = vld [vmem:[#allocation5 + $0x100] sm:$0xf]
    %v231 = vld [vmem:[#allocation5 + $0x104] sm:$0xf]
    %v232 = vld [vmem:[#allocation5 + $0x108] sm:$0xf]
    %v233 = vld [vmem:[#allocation5 + $0x10c] sm:$0xf]
    %v234 = vld [vmem:[#allocation5 + $0x110] sm:$0xf]
    %v235 = vld [vmem:[#allocation5 + $0x114] sm:$0xf]
    %v236 = vld [vmem:[#allocation5 + $0x118] sm:$0xf]
    %v237 = vld [vmem:[#allocation5 + $0x11c] sm:$0xf]
    %v238 = vld [vmem:[#allocation5 + $0x120] sm:$0xf]
    %v239 = vld [vmem:[#allocation5 + $0x124] sm:$0xf]
    %v240 = vld [vmem:[#allocation5 + $0x128] sm:$0xf]
    %v241 = vld [vmem:[#allocation5 + $0x12c] sm:$0xf]
    %v242 = vld [vmem:[#allocation5 + $0x130] sm:$0xf]
    %v243 = vld [vmem:[#allocation5 + $0x134] sm:$0xf]
    %v244 = vld [vmem:[#allocation5 + $0x138] sm:$0xf]
    %v245 = vld [vmem:[#allocation5 + $0x13c] sm:$0xf]
    %v246 = vld [vmem:[#allocation5 + $0x140] sm:$0xf]
    %v247 = vld [vmem:[#allocation5 + $0x144] sm:$0xf]
    %v248 = vld [vmem:[#allocation5 + $0x148] sm:$0xf]
    %v249 = vld [vmem:[#allocation5 + $0x14c] sm:$0xf]
    %v250 = vld [vmem:[#allocation5 + $0x150] sm:$0xf]
    %v251 = vld [vmem:[#allocation5 + $0x154] sm:$0xf]
    %v252 = vld [vmem:[#allocation5 + $0x158] sm:$0xf]
    %v253 = vld [vmem:[#allocation5 + $0x15c] sm:$0xf]
    %v254 = vld [vmem:[#allocation5 + $0x160] sm:$0xf]
    %v255 = vld [vmem:[#allocation5 + $0x164] sm:$0xf]
    %v256 = vld [vmem:[#allocation5 + $0x168] sm:$0xf]
    %v257 = vld [vmem:[#allocation5 + $0x16c] sm:$0xf]
    %v258 = vld [vmem:[#allocation5 + $0x170] sm:$0xf]
    %v259 = vld [vmem:[#allocation5 + $0x174] sm:$0xf]
    %v260 = vld [vmem:[#allocation5 + $0x178] sm:$0xf]
    %v261 = vld [vmem:[#allocation5 + $0x17c] sm:$0xf]
    %v262 = vld [vmem:[%s8] sm:$0x1]
    %v263 = vld [vmem:[%s9] sm:$0x1]
    %v264 = vld [vmem:[%s10] sm:$0xf]
    %v265 = vld [vmem:[%s10 + $0x4] sm:$0xf]
    %v266 = vld [vmem:[%s10 + $0x8] sm:$0xf]
    %v267 = vld [vmem:[%s10 + $0xc] sm:$0xf]
    %v268 = vld [vmem:[%s10 + $0x10] sm:$0xf]
    %v269 = vld [vmem:[%s10 + $0x14] sm:$0xf]
    %v270 = vld [vmem:[%s10 + $0x18] sm:$0xf]
    %v271 = vld [vmem:[%s10 + $0x1c] sm:$0xf]
    %v272 = vld [vmem:[%s10 + $0x20] sm:$0xf]
    %v273 = vld [vmem:[%s10 + $0x24] sm:$0xf]
    %v274 = vld [vmem:[%s10 + $0x28] sm:$0xf]
    %v275 = vld [vmem:[%s10 + $0x2c] sm:$0xf]
    %v276 = vld [vmem:[%s10 + $0x30] sm:$0xf]
    %v277 = vld [vmem:[%s10 + $0x34] sm:$0xf]
    %v278 = vld [vmem:[%s10 + $0x38] sm:$0xf]
    %v279 = vld [vmem:[%s10 + $0x3c] sm:$0xf]
    %v280 = vld [vmem:[%s11] sm:$0x1]
    %v285 = vunpack.c.l.b16 %v71
    %v286 = vunpack.c.l.b16 %v72
    %v287 = vunpack.c.l.b16 %v73
    %v288 = vunpack.c.l.b16 %v74
    %v289 = vpack.c.b16 %v285, %v285
    %v290 = vpack.c.b16 %v286, %v286
    %v291 = vpack.c.b16 %v287, %v287
    %v292 = vpack.c.b16 %v288, %v288
    %vm293 = vcmask 1043456
    %v296 = vsel %vm293, 0, %v289
    %v298 = vsel %vm293, 0, %v291
    %v300 = vsel %vm293, %v290, 0
    %v302 = vsel %vm293, %v292, 0
    %vm303 = vsmask.f32 5376
    %v304 = vshrl.u32 %v296, 16
    %v306 = vrot.slane %v304, 2
    %v307 = vshll.u32 %v296, 16
    %v309 = vrot.slane %v307, 3
    %v310 = vor.u32 %v306, %v309
    %v311 = vshrl.u32 %v300, 16
    %v313 = vrot.slane %v311, 2
    %v314 = vshll.u32 %v300, 16
    %v316 = vrot.slane %v314, 3
    %v317 = vor.u32 %v313, %v316
    %v318 = vsel %vm303, %v310, %v317
    %v319 = vshrl.u32 %v298, 16
    %v321 = vrot.slane %v319, 2
    %v322 = vshll.u32 %v298, 16
    %v324 = vrot.slane %v322, 3
    %v325 = vor.u32 %v321, %v324
    %v326 = vshrl.u32 %v302, 16
    %v328 = vrot.slane %v326, 2
    %v329 = vshll.u32 %v302, 16
    %v331 = vrot.slane %v329, 3
    %v332 = vor.u32 %v328, %v331
    %v333 = vsel %vm303, %v325, %v332
    %vm338 = vcmask 1044480
    %v339 = vrot.slane %v296, 3
    %v340 = vrot.slane %v300, 3
    %v341 = vsel %vm338, %v339, %v340
    %v342 = vrot.slane %v298, 3
    %v343 = vrot.slane %v302, 3
    %v344 = vsel %vm338, %v342, %v343
    %vm345 = vcmask 31744
    %v347 = vsel %vm345, %v341, 0
    %v350 = vsel %vm345, %v344, 0
    %vm352 = vcmask 1041408
    %v354 = vsel %vm352, %v76, 0
    %356 = vmatprep.subr.bf16.mxu0 0
    %357 = vmatpush1.bf16.msra.mxu0 0
    %358 = vmatprep.subr.bf16.mxu0 0
    %359 = vmatpush1.bf16.msra.mxu0 0
    %360 = vmatprep.subr.bf16.mxu0 0
    %361 = vmatpush1.bf16.msra.mxu0 0
    %362 = vmatprep.subr.bf16.mxu0 0
    %363 = vmatpush1.bf16.msra.mxu0 0
    %364 = vmatprep.subr.bf16.mxu0 0
    %365 = vmatpush1.bf16.msra.mxu0 0
    %366 = vmatprep.subr.bf16.mxu0 0
    %367 = vmatpush1.bf16.msra.mxu0 0
    %368 = vmatprep.subr.bf16.mxu0 0
    %369 = vmatpush1.bf16.msra.mxu0 0
    %370 = vmatprep.subr.bf16.mxu0 0
    %371 = vmatpush1.bf16.msra.mxu0 %v354
    %372 = vmatprep.subr.bf16.mxu0 0
    %373 = vmatpush2.bf16.msra.mxu0 0
    %374 = vmatprep.subr.bf16.mxu0 0
    %375 = vmatpush2.bf16.msra.mxu0 0
    %376 = vmatprep.subr.bf16.mxu0 0
    %377 = vmatpush2.bf16.msra.mxu0 0
    %378 = vmatprep.subr.bf16.mxu0 0
    %379 = vmatpush2.bf16.msra.mxu0 0
    %380 = vmatprep.subr.bf16.mxu0 0
    %381 = vmatpush2.bf16.msra.mxu0 0
    %382 = vmatprep.subr.bf16.mxu0 0
    %383 = vmatpush2.bf16.msra.mxu0 0
    %384 = vmatprep.subr.bf16.mxu0 0
    %385 = vmatpush2.bf16.msra.mxu0 0
    %386 = vmatprep.subr.bf16.mxu0 0
    %387 = vmatpush2.bf16.msra.mxu0 0
    %388 = vmatprep.mubr.bf16.mxu0 0
    %389 = vmatmul.mubr.bf16.gmra.mxu0 %v347
    %v390 = vpop.f32.mrf.mxu0
    %v391 = vadd.f32 0.0, %v390
    %v392 = vpop.f32.mrf.mxu0
    %v393 = vpop.f32.mrf.mxu0
    %v394 = vadd.f32 0.0, %v393
    %v395 = vpop.f32.mrf.mxu0
    %396 = vmatprep.mubr.bf16.mxu0 0
    %397 = vmatmul.mubr.bf16.gmra.mxu0 %v350
    %v398 = vpop.f32.mrf.mxu0
    %v399 = vadd.f32 0.0, %v398
    %v400 = vpop.f32.mrf.mxu0
    %v401 = vpop.f32.mrf.mxu0
    %v402 = vadd.f32 0.0, %v401
    %v403 = vpop.f32.mrf.mxu0
    %404 = vdwg.mxu0
    %v406 = vsel %vm345, %v318, 0
    %v409 = vsel %vm345, %v333, 0
    %v412 = vsel %vm352, %v75, 0
    %414 = vmatprep.subr.bf16.mxu0 0
    %415 = vmatpush1.bf16.msra.mxu0 0
    %416 = vmatprep.subr.bf16.mxu0 0
    %417 = vmatpush1.bf16.msra.mxu0 0
    %418 = vmatprep.subr.bf16.mxu0 0
    %419 = vmatpush1.bf16.msra.mxu0 0
    %420 = vmatprep.subr.bf16.mxu0 0
    %421 = vmatpush1.bf16.msra.mxu0 0
    %422 = vmatprep.subr.bf16.mxu0 0
    %423 = vmatpush1.bf16.msra.mxu0 0
    %424 = vmatprep.subr.bf16.mxu0 0
    %425 = vmatpush1.bf16.msra.mxu0 0
    %426 = vmatprep.subr.bf16.mxu0 0
    %427 = vmatpush1.bf16.msra.mxu0 0
    %428 = vmatprep.subr.bf16.mxu0 0
    %429 = vmatpush1.bf16.msra.mxu0 %v412
    %430 = vmatprep.subr.bf16.mxu0 0
    %431 = vmatpush2.bf16.msra.mxu0 0
    %432 = vmatprep.subr.bf16.mxu0 0
    %433 = vmatpush2.bf16.msra.mxu0 0
    %434 = vmatprep.subr.bf16.mxu0 0
    %435 = vmatpush2.bf16.msra.mxu0 0
    %436 = vmatprep.subr.bf16.mxu0 0
    %437 = vmatpush2.bf16.msra.mxu0 0
    %438 = vmatprep.subr.bf16.mxu0 0
    %439 = vmatpush2.bf16.msra.mxu0 0
    %440 = vmatprep.subr.bf16.mxu0 0
    %441 = vmatpush2.bf16.msra.mxu0 0
    %442 = vmatprep.subr.bf16.mxu0 0
    %443 = vmatpush2.bf16.msra.mxu0 0
    %444 = vmatprep.subr.bf16.mxu0 0
    %445 = vmatpush2.bf16.msra.mxu0 0
    %446 = vmatprep.mubr.bf16.mxu0 0
    %447 = vmatmul.mubr.bf16.gmra.mxu0 %v406
    %v448 = vpop.f32.mrf.mxu0
    %v449 = vadd.f32 %v391, %v448
    %v450 = vpop.f32.mrf.mxu0
    %v451 = vpop.f32.mrf.mxu0
    %v452 = vadd.f32 %v394, %v451
    %v453 = vpop.f32.mrf.mxu0
    %454 = vmatprep.mubr.bf16.mxu0 0
    %455 = vmatmul.mubr.bf16.gmra.mxu0 %v409
    %v456 = vpop.f32.mrf.mxu0
    %v457 = vadd.f32 %v399, %v456
    %v458 = vpop.f32.mrf.mxu0
    %v459 = vpop.f32.mrf.mxu0
    %v460 = vadd.f32 %v402, %v459
    %v461 = vpop.f32.mrf.mxu0
    %462 = vdwg.mxu0
    %vm463 = vsmask.f32 4352
    %v464 = vrot.slane %v304, 3
    %v465 = vrot.slane %v307, 4
    %v466 = vor.u32 %v464, %v465
    %v467 = vrot.slane %v311, 3
    %v468 = vrot.slane %v314, 4
    %v469 = vor.u32 %v467, %v468
    %v470 = vsel %vm463, %v466, %v469
    %v471 = vrot.slane %v319, 3
    %v472 = vrot.slane %v322, 4
    %v473 = vor.u32 %v471, %v472
    %v474 = vrot.slane %v326, 3
    %v475 = vrot.slane %v329, 4
    %v476 = vor.u32 %v474, %v475
    %v477 = vsel %vm463, %v473, %v476
    %v479 = vsel %vm345, %v470, 0
    %v482 = vsel %vm345, %v477, 0
    %v485 = vsel %vm352, %v77, 0
    %487 = vmatprep.subr.bf16.mxu0 0
    %488 = vmatpush1.bf16.msra.mxu0 0
    %489 = vmatprep.subr.bf16.mxu0 0
    %490 = vmatpush1.bf16.msra.mxu0 0
    %491 = vmatprep.subr.bf16.mxu0 0
    %492 = vmatpush1.bf16.msra.mxu0 0
    %493 = vmatprep.subr.bf16.mxu0 0
    %494 = vmatpush1.bf16.msra.mxu0 0
    %495 = vmatprep.subr.bf16.mxu0 0
    %496 = vmatpush1.bf16.msra.mxu0 0
    %497 = vmatprep.subr.bf16.mxu0 0
    %498 = vmatpush1.bf16.msra.mxu0 0
    %499 = vmatprep.subr.bf16.mxu0 0
    %500 = vmatpush1.bf16.msra.mxu0 0
    %501 = vmatprep.subr.bf16.mxu0 0
    %502 = vmatpush1.bf16.msra.mxu0 %v485
    %503 = vmatprep.subr.bf16.mxu0 0
    %504 = vmatpush2.bf16.msra.mxu0 0
    %505 = vmatprep.subr.bf16.mxu0 0
    %506 = vmatpush2.bf16.msra.mxu0 0
    %507 = vmatprep.subr.bf16.mxu0 0
    %508 = vmatpush2.bf16.msra.mxu0 0
    %509 = vmatprep.subr.bf16.mxu0 0
    %510 = vmatpush2.bf16.msra.mxu0 0
    %511 = vmatprep.subr.bf16.mxu0 0
    %512 = vmatpush2.bf16.msra.mxu0 0
    %513 = vmatprep.subr.bf16.mxu0 0
    %514 = vmatpush2.bf16.msra.mxu0 0
    %515 = vmatprep.subr.bf16.mxu0 0
    %516 = vmatpush2.bf16.msra.mxu0 0
    %517 = vmatprep.subr.bf16.mxu0 0
    %518 = vmatpush2.bf16.msra.mxu0 0
    %519 = vmatprep.mubr.bf16.mxu0 0
    %520 = vmatmul.mubr.bf16.gmra.mxu0 %v479
    %v521 = vpop.f32.mrf.mxu0
    %v522 = vadd.f32 0.0, %v521
    %v523 = vpop.f32.mrf.mxu0
    %v524 = vpop.f32.mrf.mxu0
    %v525 = vadd.f32 0.0, %v524
    %v526 = vpop.f32.mrf.mxu0
    %527 = vmatprep.mubr.bf16.mxu0 0
    %528 = vmatmul.mubr.bf16.gmra.mxu0 %v482
    %v529 = vpop.f32.mrf.mxu0
    %v530 = vadd.f32 0.0, %v529
    %v531 = vpop.f32.mrf.mxu0
    %v532 = vpop.f32.mrf.mxu0
    %v533 = vadd.f32 0.0, %v532
    %v534 = vpop.f32.mrf.mxu0
    %535 = vdwg.mxu0
    %v536 = vadd.f32 %v449, %v522
    %v537 = vadd.f32 %v452, %v525
    %v538 = vadd.f32 %v457, %v530
    %v539 = vadd.f32 %v460, %v533
    %vm540 = vcmask 1043456
    %v541 = vrot.slane %v296, 4
    %v542 = vrot.slane %v300, 4
    %v543 = vsel %vm540, %v541, %v542
    %v544 = vrot.slane %v298, 4
    %v545 = vrot.slane %v302, 4
    %v546 = vsel %vm540, %v544, %v545
    %v548 = vsel %vm345, %v543, 0
    %v551 = vsel %vm345, %v546, 0
    %v554 = vsel %vm352, %v78, 0
    %556 = vmatprep.subr.bf16.mxu0 0
    %557 = vmatpush1.bf16.msra.mxu0 0
    %558 = vmatprep.subr.bf16.mxu0 0
    %559 = vmatpush1.bf16.msra.mxu0 0
    %560 = vmatprep.subr.bf16.mxu0 0
    %561 = vmatpush1.bf16.msra.mxu0 0
    %562 = vmatprep.subr.bf16.mxu0 0
    %563 = vmatpush1.bf16.msra.mxu0 0
    %564 = vmatprep.subr.bf16.mxu0 0
    %565 = vmatpush1.bf16.msra.mxu0 0
    %566 = vmatprep.subr.bf16.mxu0 0
    %567 = vmatpush1.bf16.msra.mxu0 0
    %568 = vmatprep.subr.bf16.mxu0 0
    %569 = vmatpush1.bf16.msra.mxu0 0
    %570 = vmatprep.subr.bf16.mxu0 0
    %571 = vmatpush1.bf16.msra.mxu0 %v554
    %572 = vmatprep.subr.bf16.mxu0 0
    %573 = vmatpush2.bf16.msra.mxu0 0
    %574 = vmatprep.subr.bf16.mxu0 0
    %575 = vmatpush2.bf16.msra.mxu0 0
    %576 = vmatprep.subr.bf16.mxu0 0
    %577 = vmatpush2.bf16.msra.mxu0 0
    %578 = vmatprep.subr.bf16.mxu0 0
    %579 = vmatpush2.bf16.msra.mxu0 0
    %580 = vmatprep.subr.bf16.mxu0 0
    %581 = vmatpush2.bf16.msra.mxu0 0
    %582 = vmatprep.subr.bf16.mxu0 0
    %583 = vmatpush2.bf16.msra.mxu0 0
    %584 = vmatprep.subr.bf16.mxu0 0
    %585 = vmatpush2.bf16.msra.mxu0 0
    %586 = vmatprep.subr.bf16.mxu0 0
    %587 = vmatpush2.bf16.msra.mxu0 0
    %588 = vmatprep.mubr.bf16.mxu0 0
    %589 = vmatmul.mubr.bf16.gmra.mxu0 %v548
    %v590 = vpop.f32.mrf.mxu0
    %v591 = vadd.f32 0.0, %v590
    %v592 = vpop.f32.mrf.mxu0
    %v593 = vpop.f32.mrf.mxu0
    %v594 = vadd.f32 0.0, %v593
    %v595 = vpop.f32.mrf.mxu0
    %596 = vmatprep.mubr.bf16.mxu0 0
    %597 = vmatmul.mubr.bf16.gmra.mxu0 %v551
    %v598 = vpop.f32.mrf.mxu0
    %v599 = vadd.f32 0.0, %v598
    %v600 = vpop.f32.mrf.mxu0
    %v601 = vpop.f32.mrf.mxu0
    %v602 = vadd.f32 0.0, %v601
    %v603 = vpop.f32.mrf.mxu0
    %604 = vdwg.mxu0
    %v605 = vadd.f32 %v536, %v591
    %v606 = vadd.f32 %v537, %v594
    %v607 = vadd.f32 %v538, %v599
    %v608 = vadd.f32 %v539, %v602
    %vm609 = vsmask.f32 3328
    %v610 = vrot.slane %v304, 4
    %v611 = vrot.slane %v307, 5
    %v612 = vor.u32 %v610, %v611
    %v613 = vrot.slane %v311, 4
    %v614 = vrot.slane %v314, 5
    %v615 = vor.u32 %v613, %v614
    %v616 = vsel %vm609, %v612, %v615
    %v617 = vrot.slane %v319, 4
    %v618 = vrot.slane %v322, 5
    %v619 = vor.u32 %v617, %v618
    %v620 = vrot.slane %v326, 4
    %v621 = vrot.slane %v329, 5
    %v622 = vor.u32 %v620, %v621
    %v623 = vsel %vm609, %v619, %v622
    %v625 = vsel %vm345, %v616, 0
    %v628 = vsel %vm345, %v623, 0
    %v631 = vsel %vm352, %v79, 0
    %633 = vmatprep.subr.bf16.mxu0 0
    %634 = vmatpush1.bf16.msra.mxu0 0
    %635 = vmatprep.subr.bf16.mxu0 0
    %636 = vmatpush1.bf16.msra.mxu0 0
    %637 = vmatprep.subr.bf16.mxu0 0
    %638 = vmatpush1.bf16.msra.mxu0 0
    %639 = vmatprep.subr.bf16.mxu0 0
    %640 = vmatpush1.bf16.msra.mxu0 0
    %641 = vmatprep.subr.bf16.mxu0 0
    %642 = vmatpush1.bf16.msra.mxu0 0
    %643 = vmatprep.subr.bf16.mxu0 0
    %644 = vmatpush1.bf16.msra.mxu0 0
    %645 = vmatprep.subr.bf16.mxu0 0
    %646 = vmatpush1.bf16.msra.mxu0 0
    %647 = vmatprep.subr.bf16.mxu0 0
    %648 = vmatpush1.bf16.msra.mxu0 %v631
    %649 = vmatprep.subr.bf16.mxu0 0
    %650 = vmatpush2.bf16.msra.mxu0 0
    %651 = vmatprep.subr.bf16.mxu0 0
    %652 = vmatpush2.bf16.msra.mxu0 0
    %653 = vmatprep.subr.bf16.mxu0 0
    %654 = vmatpush2.bf16.msra.mxu0 0
    %655 = vmatprep.subr.bf16.mxu0 0
    %656 = vmatpush2.bf16.msra.mxu0 0
    %657 = vmatprep.subr.bf16.mxu0 0
    %658 = vmatpush2.bf16.msra.mxu0 0
    %659 = vmatprep.subr.bf16.mxu0 0
    %660 = vmatpush2.bf16.msra.mxu0 0
    %661 = vmatprep.subr.bf16.mxu0 0
    %662 = vmatpush2.bf16.msra.mxu0 0
    %663 = vmatprep.subr.bf16.mxu0 0
    %664 = vmatpush2.bf16.msra.mxu0 0
    %665 = vmatprep.mubr.bf16.mxu0 0
    %666 = vmatmul.mubr.bf16.gmra.mxu0 %v625
    %v667 = vpop.f32.mrf.mxu0
    %v668 = vadd.f32 0.0, %v667
    %v669 = vpop.f32.mrf.mxu0
    %v670 = vpop.f32.mrf.mxu0
    %v671 = vadd.f32 0.0, %v670
    %v672 = vpop.f32.mrf.mxu0
    %673 = vmatprep.mubr.bf16.mxu0 0
    %674 = vmatmul.mubr.bf16.gmra.mxu0 %v628
    %v675 = vpop.f32.mrf.mxu0
    %v676 = vadd.f32 0.0, %v675
    %v677 = vpop.f32.mrf.mxu0
    %v678 = vpop.f32.mrf.mxu0
    %v679 = vadd.f32 0.0, %v678
    %v680 = vpop.f32.mrf.mxu0
    %681 = vdwg.mxu0
    %v682 = vadd.f32 %v605, %v668
    %v683 = vadd.f32 %v606, %v671
    %v684 = vadd.f32 %v607, %v676
    %v685 = vadd.f32 %v608, %v679
    %vm686 = vcmask 1042432
    %v687 = vrot.slane %v296, 5
    %v688 = vrot.slane %v300, 5
    %v689 = vsel %vm686, %v687, %v688
    %v690 = vrot.slane %v298, 5
    %v691 = vrot.slane %v302, 5
    %v692 = vsel %vm686, %v690, %v691
    %v694 = vsel %vm345, %v689, 0
    %v697 = vsel %vm345, %v692, 0
    %v700 = vsel %vm352, %v80, 0
    %702 = vmatprep.subr.bf16.mxu0 0
    %703 = vmatpush1.bf16.msra.mxu0 0
    %704 = vmatprep.subr.bf16.mxu0 0
    %705 = vmatpush1.bf16.msra.mxu0 0
    %706 = vmatprep.subr.bf16.mxu0 0
    %707 = vmatpush1.bf16.msra.mxu0 0
    %708 = vmatprep.subr.bf16.mxu0 0
    %709 = vmatpush1.bf16.msra.mxu0 0
    %710 = vmatprep.subr.bf16.mxu0 0
    %711 = vmatpush1.bf16.msra.mxu0 0
    %712 = vmatprep.subr.bf16.mxu0 0
    %713 = vmatpush1.bf16.msra.mxu0 0
    %714 = vmatprep.subr.bf16.mxu0 0
    %715 = vmatpush1.bf16.msra.mxu0 0
    %716 = vmatprep.subr.bf16.mxu0 0
    %717 = vmatpush1.bf16.msra.mxu0 %v700
    %718 = vmatprep.subr.bf16.mxu0 0
    %719 = vmatpush2.bf16.msra.mxu0 0
    %720 = vmatprep.subr.bf16.mxu0 0
    %721 = vmatpush2.bf16.msra.mxu0 0
    %722 = vmatprep.subr.bf16.mxu0 0
    %723 = vmatpush2.bf16.msra.mxu0 0
    %724 = vmatprep.subr.bf16.mxu0 0
    %725 = vmatpush2.bf16.msra.mxu0 0
    %726 = vmatprep.subr.bf16.mxu0 0
    %727 = vmatpush2.bf16.msra.mxu0 0
    %728 = vmatprep.subr.bf16.mxu0 0
    %729 = vmatpush2.bf16.msra.mxu0 0
    %730 = vmatprep.subr.bf16.mxu0 0
    %731 = vmatpush2.bf16.msra.mxu0 0
    %732 = vmatprep.subr.bf16.mxu0 0
    %733 = vmatpush2.bf16.msra.mxu0 0
    %734 = vmatprep.mubr.bf16.mxu0 0
    %735 = vmatmul.mubr.bf16.gmra.mxu0 %v694
    %v736 = vpop.f32.mrf.mxu0
    %v737 = vadd.f32 0.0, %v736
    %v738 = vpop.f32.mrf.mxu0
    %v739 = vpop.f32.mrf.mxu0
    %v740 = vadd.f32 0.0, %v739
    %v741 = vpop.f32.mrf.mxu0
    %742 = vmatprep.mubr.bf16.mxu0 0
    %743 = vmatmul.mubr.bf16.gmra.mxu0 %v697
    %v744 = vpop.f32.mrf.mxu0
    %v745 = vadd.f32 0.0, %v744
    %v746 = vpop.f32.mrf.mxu0
    %v747 = vpop.f32.mrf.mxu0
    %v748 = vadd.f32 0.0, %v747
    %v749 = vpop.f32.mrf.mxu0
    %750 = vdwg.mxu0
    %v751 = vadd.f32 %v682, %v737
    %v752 = vadd.f32 %v683, %v740
    %v753 = vadd.f32 %v684, %v745
    %v754 = vadd.f32 %v685, %v748
    %vm755 = vsmask.f32 2304
    %v756 = vrot.slane %v304, 5
    %v757 = vrot.slane %v307, 6
    %v758 = vor.u32 %v756, %v757
    %v759 = vrot.slane %v311, 5
    %v760 = vrot.slane %v314, 6
    %v761 = vor.u32 %v759, %v760
    %v762 = vsel %vm755, %v758, %v761
    %v763 = vrot.slane %v319, 5
    %v764 = vrot.slane %v322, 6
    %v765 = vor.u32 %v763, %v764
    %v766 = vrot.slane %v326, 5
    %v767 = vrot.slane %v329, 6
    %v768 = vor.u32 %v766, %v767
    %v769 = vsel %vm755, %v765, %v768
    %v771 = vsel %vm345, %v762, 0
    %v774 = vsel %vm345, %v769, 0
    %v777 = vsel %vm352, %v81, 0
    %779 = vmatprep.subr.bf16.mxu0 0
    %780 = vmatpush1.bf16.msra.mxu0 0
    %781 = vmatprep.subr.bf16.mxu0 0
    %782 = vmatpush1.bf16.msra.mxu0 0
    %783 = vmatprep.subr.bf16.mxu0 0
    %784 = vmatpush1.bf16.msra.mxu0 0
    %785 = vmatprep.subr.bf16.mxu0 0
    %786 = vmatpush1.bf16.msra.mxu0 0
    %787 = vmatprep.subr.bf16.mxu0 0
    %788 = vmatpush1.bf16.msra.mxu0 0
    %789 = vmatprep.subr.bf16.mxu0 0
    %790 = vmatpush1.bf16.msra.mxu0 0
    %791 = vmatprep.subr.bf16.mxu0 0
    %792 = vmatpush1.bf16.msra.mxu0 0
    %793 = vmatprep.subr.bf16.mxu0 0
    %794 = vmatpush1.bf16.msra.mxu0 %v777
    %795 = vmatprep.subr.bf16.mxu0 0
    %796 = vmatpush2.bf16.msra.mxu0 0
    %797 = vmatprep.subr.bf16.mxu0 0
    %798 = vmatpush2.bf16.msra.mxu0 0
    %799 = vmatprep.subr.bf16.mxu0 0
    %800 = vmatpush2.bf16.msra.mxu0 0
    %801 = vmatprep.subr.bf16.mxu0 0
    %802 = vmatpush2.bf16.msra.mxu0 0
    %803 = vmatprep.subr.bf16.mxu0 0
    %804 = vmatpush2.bf16.msra.mxu0 0
    %805 = vmatprep.subr.bf16.mxu0 0
    %806 = vmatpush2.bf16.msra.mxu0 0
    %807 = vmatprep.subr.bf16.mxu0 0
    %808 = vmatpush2.bf16.msra.mxu0 0
    %809 = vmatprep.subr.bf16.mxu0 0
    %810 = vmatpush2.bf16.msra.mxu0 0
    %811 = vmatprep.mubr.bf16.mxu0 0
    %812 = vmatmul.mubr.bf16.gmra.mxu0 %v771
    %v813 = vpop.f32.mrf.mxu0
    %v814 = vadd.f32 0.0, %v813
    %v815 = vpop.f32.mrf.mxu0
    %v816 = vpop.f32.mrf.mxu0
    %v817 = vadd.f32 0.0, %v816
    %v818 = vpop.f32.mrf.mxu0
    %819 = vmatprep.mubr.bf16.mxu0 0
    %820 = vmatmul.mubr.bf16.gmra.mxu0 %v774
    %v821 = vpop.f32.mrf.mxu0
    %v822 = vadd.f32 0.0, %v821
    %v823 = vpop.f32.mrf.mxu0
    %v824 = vpop.f32.mrf.mxu0
    %v825 = vadd.f32 0.0, %v824
    %v826 = vpop.f32.mrf.mxu0
    %827 = vdwg.mxu0
    %v828 = vadd.f32 %v751, %v814
    %v829 = vadd.f32 %v752, %v817
    %v830 = vadd.f32 %v753, %v822
    %v831 = vadd.f32 %v754, %v825
    %v832 = vadd.f32 %v828, %v829
    %v833 = vadd.f32 %v832, %v830
    %v834 = vadd.f32 %v833, %v831
    %v835 = vrot.slane %v834, 4
    %v836 = vadd.f32 %v834, %v835
    %v837 = vrot.slane %v836, 2
    %v838 = vadd.f32 %v836, %v837
    %v839 = vrot.slane %v838, 1
    %v840 = vadd.f32 %v838, %v839
    %v841 = vmul.f32 %v828, %v828
    %v842 = vmul.f32 %v829, %v829
    %v843 = vmul.f32 %v830, %v830
    %v844 = vmul.f32 %v831, %v831
    %v845 = vadd.f32 %v841, %v842
    %v846 = vadd.f32 %v845, %v843
    %v847 = vadd.f32 %v846, %v844
    %v848 = vrot.slane %v847, 4
    %v849 = vadd.f32 %v847, %v848
    %v850 = vrot.slane %v849, 2
    %v851 = vadd.f32 %v849, %v850
    %v852 = vrot.slane %v851, 1
    %v853 = vadd.f32 %v851, %v852
    %v854 = vmul.f32 %v840, 0.03125
    %v855 = vmul.f32 %v853, 0.03125
    %v856 = vmul.f32 %v854, %v854
    %v857 = vsub.f32 %v855, %v856
    %v858 = vadd.f32 %v857, 1e-05
    %v859 = vrsqrt.pop %v858
    %v860 = vmul.f32 %v82, %v859
    %v861 = vmul.f32 %v854, %v860
    %v862 = vsub.f32 %v83, %v861
    %v864 = vlaneseq
    %v865 = vshrl.u32 %v864, 7
    %v866 = vsub.s32 0, %v865
    %v867 = vrot.slane %v860, %v866
    %v869 = vmul.f32 %v828, %v867
    %v870 = vmul.f32 %v829, %v867
    %v871 = vmul.f32 %v830, %v867
    %v872 = vmul.f32 %v831, %v867
    %v874 = vlaneseq
    %v875 = vshrl.u32 %v874, 7
    %v876 = vsub.s32 0, %v875
    %v877 = vrot.slane %v862, %v876
    %v879 = vadd.f32 %v869, %v877
    %v880 = vadd.f32 %v870, %v877
    %v881 = vadd.f32 %v871, %v877
    %v882 = vadd.f32 %v872, %v877
    %v883 = vmax.f32 %v879, 0.0
    %v884 = vmax.f32 %v880, 0.0
    %v885 = vmax.f32 %v881, 0.0
    %v886 = vmax.f32 %v882, 0.0
    %v887 = vpack.c.bf16 %v884, %v883
    %v888 = vpack.c.bf16 %v886, %v885
    %v891 = vrot.slane %v887, 4
    %v892 = vrot.slane %v888, 4
    %v894 = vsel %vm293, 0, %v891
    %v896 = vsel %vm293, 0, %v892
    %v897 = vsel %vm293, %v891, 0
    %v898 = vsel %vm293, %v892, 0
    %vm899 = vsmask.f32 7424
    %v900 = vshrl.u32 %v894, 16
    %v902 = vshll.u32 %v894, 16
    %v904 = vrot.slane %v902, 1
    %v905 = vor.u32 %v900, %v904
    %v906 = vshll.u32 %v897, 16
    %v908 = vrot.slane %v906, 1
    %v909 = vsel %vm899, %v905, %v908
    %v910 = vshrl.u32 %v897, 16
    %v912 = vor.u32 %v910, %v908
    %v913 = vshrl.u32 %v896, 16
    %v915 = vshll.u32 %v896, 16
    %v917 = vrot.slane %v915, 1
    %v918 = vor.u32 %v913, %v917
    %v919 = vshll.u32 %v898, 16
    %v921 = vrot.slane %v919, 1
    %v922 = vsel %vm899, %v918, %v921
    %v923 = vshrl.u32 %v898, 16
    %v925 = vor.u32 %v923, %v921
    %vm930 = vcmask 1046528
    %v931 = vrot.slane %v894, 1
    %v932 = vrot.slane %v897, 1
    %v933 = vsel %vm930, %v931, %v932
    %v934 = vrot.slane %v896, 1
    %v935 = vrot.slane %v898, 1
    %v936 = vsel %vm930, %v934, %v935
    %vm937 = vsmask.f32 6400
    %v938 = vrot.slane %v900, 1
    %v939 = vrot.slane %v902, 2
    %v940 = vor.u32 %v938, %v939
    %v941 = vrot.slane %v910, 1
    %v942 = vrot.slane %v906, 2
    %v943 = vor.u32 %v941, %v942
    %v944 = vsel %vm937, %v940, %v943
    %v945 = vrot.slane %v913, 1
    %v946 = vrot.slane %v915, 2
    %v947 = vor.u32 %v945, %v946
    %v948 = vrot.slane %v923, 1
    %v949 = vrot.slane %v919, 2
    %v950 = vor.u32 %v948, %v949
    %v951 = vsel %vm937, %v947, %v950
    %vm952 = vcmask 1045504
    %v953 = vrot.slane %v894, 2
    %v954 = vrot.slane %v897, 2
    %v955 = vsel %vm952, %v953, %v954
    %v956 = vrot.slane %v896, 2
    %v957 = vrot.slane %v898, 2
    %v958 = vsel %vm952, %v956, %v957
    %v959 = vrot.slane %v894, 3
    %v960 = vrot.slane %v897, 3
    %v961 = vsel %vm338, %v959, %v960
    %v962 = vrot.slane %v909, 3
    %v963 = vrot.slane %v912, 3
    %v964 = vsel %vm338, %v962, %v963
    %v965 = vrot.slane %v933, 3
    %v966 = vrot.slane %v932, 3
    %v967 = vsel %vm338, %v965, %v966
    %v968 = vrot.slane %v944, 3
    %v969 = vrot.slane %v943, 3
    %v970 = vsel %vm338, %v968, %v969
    %v971 = vrot.slane %v955, 3
    %v972 = vrot.slane %v954, 3
    %v973 = vsel %vm338, %v971, %v972
    %v974 = vrot.slane %v896, 3
    %v975 = vrot.slane %v898, 3
    %v976 = vsel %vm338, %v974, %v975
    %v977 = vrot.slane %v922, 3
    %v978 = vrot.slane %v925, 3
    %v979 = vsel %vm338, %v977, %v978
    %v980 = vrot.slane %v936, 3
    %v981 = vrot.slane %v935, 3
    %v982 = vsel %vm338, %v980, %v981
    %v983 = vrot.slane %v951, 3
    %v984 = vrot.slane %v950, 3
    %v985 = vsel %vm338, %v983, %v984
    %v986 = vrot.slane %v958, 3
    %v987 = vrot.slane %v957, 3
    %v988 = vsel %vm338, %v986, %v987
    %v1079 = vunpack.c.l.b16 %v84
    %v1080 = vunpack.c.h.b16 %v84
    %v1081 = vunpack.c.l.b16 %v85
    %v1082 = vunpack.c.h.b16 %v85
    %v1083 = vunpack.c.l.b16 %v86
    %v1084 = vunpack.c.h.b16 %v86
    %v1085 = vunpack.c.l.b16 %v87
    %v1086 = vunpack.c.h.b16 %v87
    %v1087 = vunpack.c.l.b16 %v88
    %v1088 = vunpack.c.h.b16 %v88
    %v1089 = vunpack.c.l.b16 %v89
    %v1090 = vunpack.c.h.b16 %v89
    %v1091 = vunpack.c.l.b16 %v90
    %v1092 = vunpack.c.h.b16 %v90
    %v1093 = vunpack.c.l.b16 %v91
    %v1094 = vunpack.c.h.b16 %v91
    %v1095 = vunpack.c.l.b16 %v92
    %v1096 = vunpack.c.h.b16 %v92
    %v1097 = vunpack.c.l.b16 %v93
    %v1098 = vunpack.c.h.b16 %v93
    %v1099 = vunpack.c.l.b16 %v94
    %v1100 = vunpack.c.h.b16 %v94
    %v1101 = vunpack.c.l.b16 %v95
    %v1102 = vunpack.c.h.b16 %v95
    %v1103 = vunpack.c.l.b16 %v96
    %v1104 = vunpack.c.h.b16 %v96
    %v1105 = vunpack.c.l.b16 %v97
    %v1106 = vunpack.c.h.b16 %v97
    %v1107 = vunpack.c.l.b16 %v98
    %v1108 = vunpack.c.h.b16 %v98
    %v1109 = vunpack.c.l.b16 %v99
    %v1110 = vunpack.c.h.b16 %v99
    %v1111 = vunpack.c.l.b16 %v100
    %v1112 = vunpack.c.h.b16 %v100
    %v1113 = vunpack.c.l.b16 %v101
    %v1114 = vunpack.c.h.b16 %v101
    %v1115 = vunpack.c.l.b16 %v102
    %v1116 = vunpack.c.h.b16 %v102
    %v1117 = vunpack.c.l.b16 %v103
    %v1118 = vunpack.c.h.b16 %v103
    %v1119 = vunpack.c.l.b16 %v104
    %v1120 = vunpack.c.h.b16 %v104
    %v1121 = vunpack.c.l.b16 %v105
    %v1122 = vunpack.c.h.b16 %v105
    %v1123 = vunpack.c.l.b16 %v106
    %v1124 = vunpack.c.h.b16 %v106
    %v1125 = vunpack.c.l.b16 %v107
    %v1126 = vunpack.c.h.b16 %v107
    %v1127 = vunpack.c.l.b16 %v108
    %v1128 = vunpack.c.h.b16 %v108
    %v1129 = vunpack.c.l.b16 %v109
    %v1130 = vunpack.c.h.b16 %v109
    %v1131 = vunpack.c.l.b16 %v110
    %v1132 = vunpack.c.h.b16 %v110
    %v1133 = vunpack.c.l.b16 %v111
    %v1134 = vunpack.c.h.b16 %v111
    %v1135 = vunpack.c.l.b16 %v112
    %v1136 = vunpack.c.h.b16 %v112
    %v1137 = vunpack.c.l.b16 %v113
    %v1138 = vunpack.c.h.b16 %v113
    %v1139 = vunpack.c.l.b16 %v114
    %v1140 = vunpack.c.h.b16 %v114
    %v1141 = vunpack.c.l.b16 %v115
    %v1142 = vunpack.c.h.b16 %v115
    %v1143 = vunpack.c.l.b16 %v116
    %v1144 = vunpack.c.h.b16 %v116
    %v1145 = vunpack.c.l.b16 %v117
    %v1146 = vunpack.c.h.b16 %v117
    %v1147 = vunpack.c.l.b16 %v118
    %v1148 = vunpack.c.h.b16 %v118
    %v1149 = vunpack.c.l.b16 %v119
    %v1150 = vunpack.c.h.b16 %v119
    %v1151 = vunpack.c.l.b16 %v120
    %v1152 = vunpack.c.h.b16 %v120
    %v1153 = vunpack.c.l.b16 %v121
    %v1154 = vunpack.c.h.b16 %v121
    %v1155 = vunpack.c.l.b16 %v122
    %v1156 = vunpack.c.h.b16 %v122
    %v1157 = vunpack.c.l.b16 %v123
    %v1158 = vunpack.c.h.b16 %v123
    %v1159 = vunpack.c.l.b16 %v124
    %v1160 = vunpack.c.h.b16 %v124
    %v1161 = vunpack.c.l.b16 %v125
    %v1162 = vunpack.c.h.b16 %v125
    %v1163 = vunpack.c.l.b16 %v126
    %v1164 = vunpack.c.h.b16 %v126
    %v1165 = vunpack.c.l.b16 %v127
    %v1166 = vunpack.c.h.b16 %v127
    %v1167 = vunpack.c.l.b16 %v128
    %v1168 = vunpack.c.h.b16 %v128
    %v1169 = vunpack.c.l.b16 %v129
    %v1170 = vunpack.c.h.b16 %v129
    %v1171 = vunpack.c.l.b16 %v130
    %v1172 = vunpack.c.h.b16 %v130
    %v1173 = vunpack.c.l.b16 %v131
    %v1174 = vunpack.c.h.b16 %v131
    %v1175 = vunpack.c.l.b16 %v132
    %v1176 = vunpack.c.h.b16 %v132
    %v1177 = vunpack.c.l.b16 %v133
    %v1178 = vunpack.c.h.b16 %v133
    %v1179 = vunpack.c.l.b16 %v134
    %v1180 = vunpack.c.h.b16 %v134
    %v1181 = vunpack.c.l.b16 %v135
    %v1182 = vunpack.c.h.b16 %v135
    %v1183 = vunpack.c.l.b16 %v136
    %v1184 = vunpack.c.h.b16 %v136
    %v1185 = vunpack.c.l.b16 %v137
    %v1186 = vunpack.c.h.b16 %v137
    %v1187 = vunpack.c.l.b16 %v138
    %v1188 = vunpack.c.h.b16 %v138
    %v1189 = vunpack.c.l.b16 %v139
    %v1190 = vunpack.c.h.b16 %v139
    %v1191 = vunpack.c.l.b16 %v140
    %v1192 = vunpack.c.h.b16 %v140
    %v1193 = vunpack.c.l.b16 %v141
    %v1194 = vunpack.c.h.b16 %v141
    %v1195 = vunpack.c.l.b16 %v142
    %v1196 = vunpack.c.h.b16 %v142
    %v1197 = vunpack.c.l.b16 %v143
    %v1198 = vunpack.c.h.b16 %v143
    %v1199 = vunpack.c.l.b16 %v144
    %v1200 = vunpack.c.h.b16 %v144
    %v1201 = vunpack.c.l.b16 %v145
    %v1202 = vunpack.c.h.b16 %v145
    %v1203 = vunpack.c.l.b16 %v146
    %v1204 = vunpack.c.h.b16 %v146
    %v1205 = vunpack.c.l.b16 %v147
    %v1206 = vunpack.c.h.b16 %v147
    %v1207 = vunpack.c.l.b16 %v148
    %v1208 = vunpack.c.h.b16 %v148
    %v1209 = vunpack.c.l.b16 %v149
    %v1210 = vunpack.c.h.b16 %v149
    %v1211 = vunpack.c.l.b16 %v150
    %v1212 = vunpack.c.h.b16 %v150
    %v1213 = vunpack.c.l.b16 %v151
    %v1214 = vunpack.c.h.b16 %v151
    %v1215 = vunpack.c.l.b16 %v152
    %v1216 = vunpack.c.h.b16 %v152
    %v1217 = vunpack.c.l.b16 %v153
    %v1218 = vunpack.c.h.b16 %v153
    %v1219 = vunpack.c.l.b16 %v154
    %v1220 = vunpack.c.h.b16 %v154
    %v1221 = vunpack.c.l.b16 %v155
    %v1222 = vunpack.c.h.b16 %v155
    %v1223 = vunpack.c.l.b16 %v156
    %v1224 = vunpack.c.h.b16 %v156
    %v1225 = vunpack.c.l.b16 %v157
    %v1226 = vunpack.c.h.b16 %v157
    %v1227 = vunpack.c.l.b16 %v158
    %v1228 = vunpack.c.h.b16 %v158
    %v1229 = vunpack.c.l.b16 %v159
    %v1230 = vunpack.c.h.b16 %v159
    %v1231 = vunpack.c.l.b16 %v160
    %v1232 = vunpack.c.h.b16 %v160
    %v1233 = vunpack.c.l.b16 %v161
    %v1234 = vunpack.c.h.b16 %v161
    %v1235 = vunpack.c.l.b16 %v162
    %v1236 = vunpack.c.h.b16 %v162
    %v1237 = vunpack.c.l.b16 %v163
    %v1238 = vunpack.c.h.b16 %v163
    %v1239 = vpack.c.b16 %v1081, %v1079
    %v1240 = vpack.c.b16 %v1082, %v1080
    %v1241 = vpack.c.b16 %v1085, %v1083
    %v1242 = vpack.c.b16 %v1086, %v1084
    %v1243 = vpack.c.b16 %v1089, %v1087
    %v1244 = vpack.c.b16 %v1090, %v1088
    %v1245 = vpack.c.b16 %v1093, %v1091
    %v1246 = vpack.c.b16 %v1094, %v1092
    %v1247 = vpack.c.b16 %v1097, %v1095
    %v1248 = vpack.c.b16 %v1098, %v1096
    %v1249 = vpack.c.b16 %v1101, %v1099
    %v1250 = vpack.c.b16 %v1102, %v1100
    %v1251 = vpack.c.b16 %v1105, %v1103
    %v1252 = vpack.c.b16 %v1106, %v1104
    %v1253 = vpack.c.b16 %v1109, %v1107
    %v1254 = vpack.c.b16 %v1110, %v1108
    %v1255 = vpack.c.b16 %v1113, %v1111
    %v1256 = vpack.c.b16 %v1114, %v1112
    %v1257 = vpack.c.b16 %v1117, %v1115
    %v1258 = vpack.c.b16 %v1118, %v1116
    %v1259 = vpack.c.b16 %v1121, %v1119
    %v1260 = vpack.c.b16 %v1122, %v1120
    %v1261 = vpack.c.b16 %v1125, %v1123
    %v1262 = vpack.c.b16 %v1126, %v1124
    %v1263 = vpack.c.b16 %v1129, %v1127
    %v1264 = vpack.c.b16 %v1130, %v1128
    %v1265 = vpack.c.b16 %v1133, %v1131
    %v1266 = vpack.c.b16 %v1134, %v1132
    %v1267 = vpack.c.b16 %v1137, %v1135
    %v1268 = vpack.c.b16 %v1138, %v1136
    %v1269 = vpack.c.b16 %v1141, %v1139
    %v1270 = vpack.c.b16 %v1142, %v1140
    %v1271 = vpack.c.b16 %v1145, %v1143
    %v1272 = vpack.c.b16 %v1146, %v1144
    %v1273 = vpack.c.b16 %v1149, %v1147
    %v1274 = vpack.c.b16 %v1150, %v1148
    %v1275 = vpack.c.b16 %v1153, %v1151
    %v1276 = vpack.c.b16 %v1154, %v1152
    %v1277 = vpack.c.b16 %v1157, %v1155
    %v1278 = vpack.c.b16 %v1158, %v1156
    %v1279 = vpack.c.b16 %v1161, %v1159
    %v1280 = vpack.c.b16 %v1162, %v1160
    %v1281 = vpack.c.b16 %v1165, %v1163
    %v1282 = vpack.c.b16 %v1166, %v1164
    %v1283 = vpack.c.b16 %v1169, %v1167
    %v1284 = vpack.c.b16 %v1170, %v1168
    %v1285 = vpack.c.b16 %v1173, %v1171
    %v1286 = vpack.c.b16 %v1174, %v1172
    %v1287 = vpack.c.b16 %v1177, %v1175
    %v1288 = vpack.c.b16 %v1178, %v1176
    %v1289 = vpack.c.b16 %v1181, %v1179
    %v1290 = vpack.c.b16 %v1182, %v1180
    %v1291 = vpack.c.b16 %v1185, %v1183
    %v1292 = vpack.c.b16 %v1186, %v1184
    %v1293 = vpack.c.b16 %v1189, %v1187
    %v1294 = vpack.c.b16 %v1190, %v1188
    %v1295 = vpack.c.b16 %v1193, %v1191
    %v1296 = vpack.c.b16 %v1194, %v1192
    %v1297 = vpack.c.b16 %v1197, %v1195
    %v1298 = vpack.c.b16 %v1198, %v1196
    %v1299 = vpack.c.b16 %v1201, %v1199
    %v1300 = vpack.c.b16 %v1202, %v1200
    %v1301 = vpack.c.b16 %v1205, %v1203
    %v1302 = vpack.c.b16 %v1206, %v1204
    %v1303 = vpack.c.b16 %v1209, %v1207
    %v1304 = vpack.c.b16 %v1210, %v1208
    %v1305 = vpack.c.b16 %v1213, %v1211
    %v1306 = vpack.c.b16 %v1214, %v1212
    %v1307 = vpack.c.b16 %v1217, %v1215
    %v1308 = vpack.c.b16 %v1218, %v1216
    %v1309 = vpack.c.b16 %v1221, %v1219
    %v1310 = vpack.c.b16 %v1222, %v1220
    %v1311 = vpack.c.b16 %v1225, %v1223
    %v1312 = vpack.c.b16 %v1226, %v1224
    %v1313 = vpack.c.b16 %v1229, %v1227
    %v1314 = vpack.c.b16 %v1230, %v1228
    %v1315 = vpack.c.b16 %v1233, %v1231
    %v1316 = vpack.c.b16 %v1234, %v1232
    %v1317 = vpack.c.b16 %v1237, %v1235
    %v1318 = vpack.c.b16 %v1238, %v1236
    %1399 = vmatprep.subr.bf16.mxu0 %v1254
    %1400 = vmatpush1.bf16.msra.mxu0 %v1253
    %1401 = vmatprep.subr.bf16.mxu0 %v1252
    %1402 = vmatpush1.bf16.msra.mxu0 %v1251
    %1403 = vmatprep.subr.bf16.mxu0 %v1250
    %1404 = vmatpush1.bf16.msra.mxu0 %v1249
    %1405 = vmatprep.subr.bf16.mxu0 %v1248
    %1406 = vmatpush1.bf16.msra.mxu0 %v1247
    %1407 = vmatprep.subr.bf16.mxu0 %v1246
    %1408 = vmatpush1.bf16.msra.mxu0 %v1245
    %1409 = vmatprep.subr.bf16.mxu0 %v1244
    %1410 = vmatpush1.bf16.msra.mxu0 %v1243
    %1411 = vmatprep.subr.bf16.mxu0 %v1242
    %1412 = vmatpush1.bf16.msra.mxu0 %v1241
    %1413 = vmatprep.subr.bf16.mxu0 %v1240
    %1414 = vmatpush1.bf16.msra.mxu0 %v1239
    %1415 = vmatprep.subr.bf16.mxu0 %v1270
    %1416 = vmatpush2.bf16.msra.mxu0 %v1269
    %1417 = vmatprep.subr.bf16.mxu0 %v1268
    %1418 = vmatpush2.bf16.msra.mxu0 %v1267
    %1419 = vmatprep.subr.bf16.mxu0 %v1266
    %1420 = vmatpush2.bf16.msra.mxu0 %v1265
    %1421 = vmatprep.subr.bf16.mxu0 %v1264
    %1422 = vmatpush2.bf16.msra.mxu0 %v1263
    %1423 = vmatprep.subr.bf16.mxu0 %v1262
    %1424 = vmatpush2.bf16.msra.mxu0 %v1261
    %1425 = vmatprep.subr.bf16.mxu0 %v1260
    %1426 = vmatpush2.bf16.msra.mxu0 %v1259
    %1427 = vmatprep.subr.bf16.mxu0 %v1258
    %1428 = vmatpush2.bf16.msra.mxu0 %v1257
    %1429 = vmatprep.subr.bf16.mxu0 %v1256
    %1430 = vmatpush2.bf16.msra.mxu0 %v1255
    %1431 = vmatprep.mubr.bf16.mxu0 %v964
    %1432 = vmatmul.mubr.bf16.gmra.mxu0 %v961
    %v1433 = vpop.f32.mrf.mxu0
    %v1434 = vadd.f32 0.0, %v1433
    %v1435 = vpop.f32.mrf.mxu0
    %v1436 = vadd.f32 0.0, %v1435
    %v1437 = vpop.f32.mrf.mxu0
    %v1438 = vadd.f32 0.0, %v1437
    %v1439 = vpop.f32.mrf.mxu0
    %v1440 = vadd.f32 0.0, %v1439
    %1441 = vmatprep.mubr.bf16.mxu0 %v979
    %1442 = vmatmul.mubr.bf16.gmra.mxu0 %v976
    %v1443 = vpop.f32.mrf.mxu0
    %v1444 = vadd.f32 0.0, %v1443
    %v1445 = vpop.f32.mrf.mxu0
    %v1446 = vadd.f32 0.0, %v1445
    %v1447 = vpop.f32.mrf.mxu0
    %v1448 = vadd.f32 0.0, %v1447
    %v1449 = vpop.f32.mrf.mxu0
    %v1450 = vadd.f32 0.0, %v1449
    %1451 = vdwg.mxu0
    %1452 = vmatprep.subr.bf16.mxu0 %v1286
    %1453 = vmatpush1.bf16.msra.mxu0 %v1285
    %1454 = vmatprep.subr.bf16.mxu0 %v1284
    %1455 = vmatpush1.bf16.msra.mxu0 %v1283
    %1456 = vmatprep.subr.bf16.mxu0 %v1282
    %1457 = vmatpush1.bf16.msra.mxu0 %v1281
    %1458 = vmatprep.subr.bf16.mxu0 %v1280
    %1459 = vmatpush1.bf16.msra.mxu0 %v1279
    %1460 = vmatprep.subr.bf16.mxu0 %v1278
    %1461 = vmatpush1.bf16.msra.mxu0 %v1277
    %1462 = vmatprep.subr.bf16.mxu0 %v1276
    %1463 = vmatpush1.bf16.msra.mxu0 %v1275
    %1464 = vmatprep.subr.bf16.mxu0 %v1274
    %1465 = vmatpush1.bf16.msra.mxu0 %v1273
    %1466 = vmatprep.subr.bf16.mxu0 %v1272
    %1467 = vmatpush1.bf16.msra.mxu0 %v1271
    %1468 = vmatprep.subr.bf16.mxu0 %v1302
    %1469 = vmatpush2.bf16.msra.mxu0 %v1301
    %1470 = vmatprep.subr.bf16.mxu0 %v1300
    %1471 = vmatpush2.bf16.msra.mxu0 %v1299
    %1472 = vmatprep.subr.bf16.mxu0 %v1298
    %1473 = vmatpush2.bf16.msra.mxu0 %v1297
    %1474 = vmatprep.subr.bf16.mxu0 %v1296
    %1475 = vmatpush2.bf16.msra.mxu0 %v1295
    %1476 = vmatprep.subr.bf16.mxu0 %v1294
    %1477 = vmatpush2.bf16.msra.mxu0 %v1293
    %1478 = vmatprep.subr.bf16.mxu0 %v1292
    %1479 = vmatpush2.bf16.msra.mxu0 %v1291
    %1480 = vmatprep.subr.bf16.mxu0 %v1290
    %1481 = vmatpush2.bf16.msra.mxu0 %v1289
    %1482 = vmatprep.subr.bf16.mxu0 %v1288
    %1483 = vmatpush2.bf16.msra.mxu0 %v1287
    %1484 = vmatprep.mubr.bf16.mxu0 %v970
    %1485 = vmatmul.mubr.bf16.gmra.mxu0 %v967
    %v1486 = vpop.f32.mrf.mxu0
    %v1487 = vadd.f32 %v1434, %v1486
    %v1488 = vpop.f32.mrf.mxu0
    %v1489 = vadd.f32 %v1436, %v1488
    %v1490 = vpop.f32.mrf.mxu0
    %v1491 = vadd.f32 %v1438, %v1490
    %v1492 = vpop.f32.mrf.mxu0
    %v1493 = vadd.f32 %v1440, %v1492
    %1494 = vmatprep.mubr.bf16.mxu0 %v985
    %1495 = vmatmul.mubr.bf16.gmra.mxu0 %v982
    %v1496 = vpop.f32.mrf.mxu0
    %v1497 = vadd.f32 %v1444, %v1496
    %v1498 = vpop.f32.mrf.mxu0
    %v1499 = vadd.f32 %v1446, %v1498
    %v1500 = vpop.f32.mrf.mxu0
    %v1501 = vadd.f32 %v1448, %v1500
    %v1502 = vpop.f32.mrf.mxu0
    %v1503 = vadd.f32 %v1450, %v1502
    %1504 = vdwg.mxu0
    %1505 = vmatprep.subr.bf16.mxu0 %v1318
    %1506 = vmatpush1.bf16.msra.mxu0 %v1317
    %1507 = vmatprep.subr.bf16.mxu0 %v1316
    %1508 = vmatpush1.bf16.msra.mxu0 %v1315
    %1509 = vmatprep.subr.bf16.mxu0 %v1314
    %1510 = vmatpush1.bf16.msra.mxu0 %v1313
    %1511 = vmatprep.subr.bf16.mxu0 %v1312
    %1512 = vmatpush1.bf16.msra.mxu0 %v1311
    %1513 = vmatprep.subr.bf16.mxu0 %v1310
    %1514 = vmatpush1.bf16.msra.mxu0 %v1309
    %1515 = vmatprep.subr.bf16.mxu0 %v1308
    %1516 = vmatpush1.bf16.msra.mxu0 %v1307
    %1517 = vmatprep.subr.bf16.mxu0 %v1306
    %1518 = vmatpush1.bf16.msra.mxu0 %v1305
    %1519 = vmatprep.subr.bf16.mxu0 %v1304
    %1520 = vmatpush1.bf16.msra.mxu0 %v1303
    %1521 = vmatprep.subr.bf16.mxu0 0
    %1522 = vmatpush2.bf16.msra.mxu0 0
    %1523 = vmatprep.subr.bf16.mxu0 0
    %1524 = vmatpush2.bf16.msra.mxu0 0
    %1525 = vmatprep.subr.bf16.mxu0 0
    %1526 = vmatpush2.bf16.msra.mxu0 0
    %1527 = vmatprep.subr.bf16.mxu0 0
    %1528 = vmatpush2.bf16.msra.mxu0 0
    %1529 = vmatprep.subr.bf16.mxu0 0
    %1530 = vmatpush2.bf16.msra.mxu0 0
    %1531 = vmatprep.subr.bf16.mxu0 0
    %1532 = vmatpush2.bf16.msra.mxu0 0
    %1533 = vmatprep.subr.bf16.mxu0 0
    %1534 = vmatpush2.bf16.msra.mxu0 0
    %1535 = vmatprep.subr.bf16.mxu0 0
    %1536 = vmatpush2.bf16.msra.mxu0 0
    %1537 = vmatprep.mubr.bf16.mxu0 0
    %1538 = vmatmul.mubr.bf16.gmra.mxu0 %v973
    %v1539 = vpop.f32.mrf.mxu0
    %v1540 = vadd.f32 %v1487, %v1539
    %v1541 = vpop.f32.mrf.mxu0
    %v1542 = vadd.f32 %v1489, %v1541
    %v1543 = vpop.f32.mrf.mxu0
    %v1544 = vadd.f32 %v1491, %v1543
    %v1545 = vpop.f32.mrf.mxu0
    %v1546 = vadd.f32 %v1493, %v1545
    %1547 = vmatprep.mubr.bf16.mxu0 0
    %1548 = vmatmul.mubr.bf16.gmra.mxu0 %v988
    %v1549 = vpop.f32.mrf.mxu0
    %v1550 = vadd.f32 %v1497, %v1549
    %v1551 = vpop.f32.mrf.mxu0
    %v1552 = vadd.f32 %v1499, %v1551
    %v1553 = vpop.f32.mrf.mxu0
    %v1554 = vadd.f32 %v1501, %v1553
    %v1555 = vpop.f32.mrf.mxu0
    %v1556 = vadd.f32 %v1503, %v1555
    %1557 = vdwg.mxu0
    %v1558 = vadd.f32 %v1540, %v1544
    %v1559 = vadd.f32 %v1558, %v1550
    %v1560 = vadd.f32 %v1559, %v1554
    %v1561 = vrot.slane %v1560, 4
    %v1562 = vadd.f32 %v1560, %v1561
    %v1563 = vrot.slane %v1562, 2
    %v1564 = vadd.f32 %v1562, %v1563
    %v1565 = vrot.slane %v1564, 1
    %v1566 = vadd.f32 %v1564, %v1565
    %v1567 = vadd.f32 %v1542, %v1546
    %v1568 = vadd.f32 %v1567, %v1552
    %v1569 = vadd.f32 %v1568, %v1556
    %v1570 = vrot.slane %v1569, 4
    %v1571 = vadd.f32 %v1569, %v1570
    %v1572 = vrot.slane %v1571, 2
    %v1573 = vadd.f32 %v1571, %v1572
    %v1574 = vrot.slane %v1573, 1
    %v1575 = vadd.f32 %v1573, %v1574
    %v1576 = vmul.f32 %v1540, %v1540
    %v1577 = vmul.f32 %v1542, %v1542
    %v1578 = vmul.f32 %v1544, %v1544
    %v1579 = vmul.f32 %v1546, %v1546
    %v1580 = vmul.f32 %v1550, %v1550
    %v1581 = vmul.f32 %v1552, %v1552
    %v1582 = vmul.f32 %v1554, %v1554
    %v1583 = vmul.f32 %v1556, %v1556
    %v1584 = vadd.f32 %v1576, %v1578
    %v1585 = vadd.f32 %v1584, %v1580
    %v1586 = vadd.f32 %v1585, %v1582
    %v1587 = vrot.slane %v1586, 4
    %v1588 = vadd.f32 %v1586, %v1587
    %v1589 = vrot.slane %v1588, 2
    %v1590 = vadd.f32 %v1588, %v1589
    %v1591 = vrot.slane %v1590, 1
    %v1592 = vadd.f32 %v1590, %v1591
    %v1593 = vadd.f32 %v1577, %v1579
    %v1594 = vadd.f32 %v1593, %v1581
    %v1595 = vadd.f32 %v1594, %v1583
    %v1596 = vrot.slane %v1595, 4
    %v1597 = vadd.f32 %v1595, %v1596
    %v1598 = vrot.slane %v1597, 2
    %v1599 = vadd.f32 %v1597, %v1598
    %v1600 = vrot.slane %v1599, 1
    %v1601 = vadd.f32 %v1599, %v1600
    %v1602 = vmul.f32 %v1566, 0.03125
    %v1603 = vmul.f32 %v1575, 0.03125
    %v1604 = vmul.f32 %v1592, 0.03125
    %v1605 = vmul.f32 %v1601, 0.03125
    %v1606 = vmul.f32 %v1602, %v1602
    %v1607 = vmul.f32 %v1603, %v1603
    %v1608 = vsub.f32 %v1604, %v1606
    %v1609 = vsub.f32 %v1605, %v1607
    %v1610 = vadd.f32 %v1608, 1e-05
    %v1611 = vadd.f32 %v1609, 1e-05
    %v1612 = vrsqrt.pop %v1610
    %v1613 = vrsqrt.pop %v1611
    %v1616 = vcombine.low %v1612, %v1613
    %v1618 = vunpack.c.l.s4 1966171168
    %v1619 = vunpack.c.0.s8 %v1618
    %v1620 = vlaneseq
    %v1621 = vshrl.u32 %v1620, 7
    %v1622 = vsub.s32 %v1619, %v1621
    %v1623 = vrot.slane %v1616, %v1622
    %v1625 = vunpack.c.l.s4 1966171168
    %v1626 = vunpack.c.0.s8 %v1625
    %v1627 = vlaneseq
    %v1628 = vshrl.u32 %v1627, 7
    %v1629 = vsub.s32 %v1626, %v1628
    %v1630 = vrot.slane %v1623, %v1629
    %v1632 = vmul.f32 %v164, %v1630
    %v1634 = vlaneseq
    %v1635 = vshrl.u32 %v1634, 7
    %v1636 = vsub.s32 0, %v1635
    %v1637 = vrot.slane %v1632, %v1636
    %v1638 = vlaneseq
    %v1639 = vshrl.u32 %v1638, 7
    %v1640 = vsub.s32 1, %v1639
    %v1641 = vrot.slane %v1632, %v1640
    %v1644 = vmul.f32 %v1602, %v1637
    %v1645 = vmul.f32 %v1603, %v1641
    %v1648 = vcombine.low %v1644, %v1645
    %v1650 = vunpack.c.l.s4 1966171168
    %v1651 = vunpack.c.0.s8 %v1650
    %v1652 = vlaneseq
    %v1653 = vshrl.u32 %v1652, 7
    %v1654 = vsub.s32 %v1651, %v1653
    %v1655 = vrot.slane %v1648, %v1654
    %v1657 = vunpack.c.l.s4 1966171168
    %v1658 = vunpack.c.0.s8 %v1657
    %v1659 = vlaneseq
    %v1660 = vshrl.u32 %v1659, 7
    %v1661 = vsub.s32 %v1658, %v1660
    %v1662 = vrot.slane %v1655, %v1661
    %v1664 = vsub.f32 %v165, %v1662
    %v1665 = vmul.f32 %v1540, %v1637
    %v1666 = vmul.f32 %v1542, %v1641
    %v1667 = vmul.f32 %v1544, %v1637
    %v1668 = vmul.f32 %v1546, %v1641
    %v1669 = vmul.f32 %v1550, %v1637
    %v1670 = vmul.f32 %v1552, %v1641
    %v1671 = vmul.f32 %v1554, %v1637
    %v1672 = vmul.f32 %v1556, %v1641
    %v1674 = vlaneseq
    %v1675 = vshrl.u32 %v1674, 7
    %v1676 = vsub.s32 0, %v1675
    %v1677 = vrot.slane %v1664, %v1676
    %v1678 = vlaneseq
    %v1679 = vshrl.u32 %v1678, 7
    %v1680 = vsub.s32 1, %v1679
    %v1681 = vrot.slane %v1664, %v1680
    %v1684 = vadd.f32 %v1665, %v1677
    %v1685 = vadd.f32 %v1666, %v1681
    %v1686 = vadd.f32 %v1667, %v1677
    %v1687 = vadd.f32 %v1668, %v1681
    %v1688 = vadd.f32 %v1669, %v1677
    %v1689 = vadd.f32 %v1670, %v1681
    %v1690 = vadd.f32 %v1671, %v1677
    %v1691 = vadd.f32 %v1672, %v1681
    %v1692 = vmax.f32 %v1684, 0.0
    %v1693 = vmax.f32 %v1685, 0.0
    %v1694 = vmax.f32 %v1686, 0.0
    %v1695 = vmax.f32 %v1687, 0.0
    %v1696 = vmax.f32 %v1688, 0.0
    %v1697 = vmax.f32 %v1689, 0.0
    %v1698 = vmax.f32 %v1690, 0.0
    %v1699 = vmax.f32 %v1691, 0.0
    %v1700 = vpack.c.bf16 %v1694, %v1692
    %v1701 = vpack.c.bf16 %v1695, %v1693
    %v1702 = vpack.c.bf16 %v1698, %v1696
    %v1703 = vpack.c.bf16 %v1699, %v1697
    %v1708 = vrot.slane %v1700, 4
    %v1709 = vrot.slane %v1701, 4
    %v1710 = vrot.slane %v1702, 4
    %v1711 = vrot.slane %v1703, 4
    %v1713 = vsel %vm293, 0, %v1708
    %v1715 = vsel %vm293, 0, %v1709
    %v1717 = vsel %vm293, 0, %v1710
    %v1719 = vsel %vm293, 0, %v1711
    %v1720 = vsel %vm293, %v1708, 0
    %v1721 = vsel %vm293, %v1709, 0
    %v1722 = vsel %vm293, %v1710, 0
    %v1723 = vsel %vm293, %v1711, 0
    %v1724 = vshrl.u32 %v1713, 16
    %v1726 = vrot.slane %v1724, 3
    %v1727 = vshll.u32 %v1713, 16
    %v1729 = vrot.slane %v1727, 4
    %v1730 = vor.u32 %v1726, %v1729
    %v1731 = vshrl.u32 %v1720, 16
    %v1733 = vrot.slane %v1731, 3
    %v1734 = vshll.u32 %v1720, 16
    %v1736 = vrot.slane %v1734, 4
    %v1737 = vor.u32 %v1733, %v1736
    %v1738 = vsel %vm463, %v1730, %v1737
    %v1739 = vshrl.u32 %v1715, 16
    %v1741 = vrot.slane %v1739, 3
    %v1742 = vshll.u32 %v1715, 16
    %v1744 = vrot.slane %v1742, 4
    %v1745 = vor.u32 %v1741, %v1744
    %v1746 = vshrl.u32 %v1721, 16
    %v1748 = vrot.slane %v1746, 3
    %v1749 = vshll.u32 %v1721, 16
    %v1751 = vrot.slane %v1749, 4
    %v1752 = vor.u32 %v1748, %v1751
    %v1753 = vsel %vm463, %v1745, %v1752
    %v1754 = vshrl.u32 %v1717, 16
    %v1756 = vrot.slane %v1754, 3
    %v1757 = vshll.u32 %v1717, 16
    %v1759 = vrot.slane %v1757, 4
    %v1760 = vor.u32 %v1756, %v1759
    %v1761 = vshrl.u32 %v1722, 16
    %v1763 = vrot.slane %v1761, 3
    %v1764 = vshll.u32 %v1722, 16
    %v1766 = vrot.slane %v1764, 4
    %v1767 = vor.u32 %v1763, %v1766
    %v1768 = vsel %vm463, %v1760, %v1767
    %v1769 = vshrl.u32 %v1719, 16
    %v1771 = vrot.slane %v1769, 3
    %v1772 = vshll.u32 %v1719, 16
    %v1774 = vrot.slane %v1772, 4
    %v1775 = vor.u32 %v1771, %v1774
    %v1776 = vshrl.u32 %v1723, 16
    %v1778 = vrot.slane %v1776, 3
    %v1779 = vshll.u32 %v1723, 16
    %v1781 = vrot.slane %v1779, 4
    %v1782 = vor.u32 %v1778, %v1781
    %v1783 = vsel %vm463, %v1775, %v1782
    %v1796 = vrot.slane %v1713, 4
    %v1797 = vrot.slane %v1720, 4
    %v1798 = vsel %vm540, %v1796, %v1797
    %v1799 = vrot.slane %v1715, 4
    %v1800 = vrot.slane %v1721, 4
    %v1801 = vsel %vm540, %v1799, %v1800
    %v1802 = vrot.slane %v1717, 4
    %v1803 = vrot.slane %v1722, 4
    %v1804 = vsel %vm540, %v1802, %v1803
    %v1805 = vrot.slane %v1719, 4
    %v1806 = vrot.slane %v1723, 4
    %v1807 = vsel %vm540, %v1805, %v1806
    %v1844 = vunpack.c.l.b16 %v198
    %v1845 = vunpack.c.l.b16 %v199
    %v1846 = vunpack.c.l.b16 %v200
    %v1847 = vunpack.c.l.b16 %v201
    %v1848 = vunpack.c.l.b16 %v202
    %v1849 = vunpack.c.l.b16 %v203
    %v1850 = vunpack.c.l.b16 %v204
    %v1851 = vunpack.c.l.b16 %v205
    %v1852 = vunpack.c.l.b16 %v206
    %v1853 = vunpack.c.l.b16 %v207
    %v1854 = vunpack.c.l.b16 %v208
    %v1855 = vunpack.c.l.b16 %v209
    %v1856 = vunpack.c.l.b16 %v210
    %v1857 = vunpack.c.l.b16 %v211
    %v1858 = vunpack.c.l.b16 %v212
    %v1859 = vunpack.c.l.b16 %v213
    %v1860 = vunpack.c.l.b16 %v214
    %v1861 = vunpack.c.l.b16 %v215
    %v1862 = vunpack.c.l.b16 %v216
    %v1863 = vunpack.c.l.b16 %v217
    %v1864 = vunpack.c.l.b16 %v218
    %v1865 = vunpack.c.l.b16 %v219
    %v1866 = vunpack.c.l.b16 %v220
    %v1867 = vunpack.c.l.b16 %v221
    %v1868 = vunpack.c.l.b16 %v222
    %v1869 = vunpack.c.l.b16 %v223
    %v1870 = vunpack.c.l.b16 %v224
    %v1871 = vunpack.c.l.b16 %v225
    %v1872 = vunpack.c.l.b16 %v226
    %v1873 = vunpack.c.l.b16 %v227
    %v1874 = vunpack.c.l.b16 %v228
    %v1875 = vunpack.c.l.b16 %v229
    %v1876 = vpack.c.b16 %v1845, %v1844
    %v1877 = vpack.c.b16 %v1847, %v1846
    %v1878 = vpack.c.b16 %v1849, %v1848
    %v1879 = vpack.c.b16 %v1851, %v1850
    %v1880 = vpack.c.b16 %v1853, %v1852
    %v1881 = vpack.c.b16 %v1855, %v1854
    %v1882 = vpack.c.b16 %v1857, %v1856
    %v1883 = vpack.c.b16 %v1859, %v1858
    %v1884 = vpack.c.b16 %v1861, %v1860
    %v1885 = vpack.c.b16 %v1863, %v1862
    %v1886 = vpack.c.b16 %v1865, %v1864
    %v1887 = vpack.c.b16 %v1867, %v1866
    %v1888 = vpack.c.b16 %v1869, %v1868
    %v1889 = vpack.c.b16 %v1871, %v1870
    %v1890 = vpack.c.b16 %v1873, %v1872
    %v1891 = vpack.c.b16 %v1875, %v1874
    %1908 = vmatprep.subr.bf16.mxu0 0
    %1909 = vmatpush1.bf16.msra.mxu0 %v1883
    %1910 = vmatprep.subr.bf16.mxu0 0
    %1911 = vmatpush1.bf16.msra.mxu0 %v1882
    %1912 = vmatprep.subr.bf16.mxu0 0
    %1913 = vmatpush1.bf16.msra.mxu0 %v1881
    %1914 = vmatprep.subr.bf16.mxu0 0
    %1915 = vmatpush1.bf16.msra.mxu0 %v1880
    %1916 = vmatprep.subr.bf16.mxu0 0
    %1917 = vmatpush1.bf16.msra.mxu0 %v1879
    %1918 = vmatprep.subr.bf16.mxu0 0
    %1919 = vmatpush1.bf16.msra.mxu0 %v1878
    %1920 = vmatprep.subr.bf16.mxu0 0
    %1921 = vmatpush1.bf16.msra.mxu0 %v1877
    %1922 = vmatprep.subr.bf16.mxu0 0
    %1923 = vmatpush1.bf16.msra.mxu0 %v1876
    %1924 = vmatprep.subr.bf16.mxu0 0
    %1925 = vmatpush2.bf16.msra.mxu0 %v1891
    %1926 = vmatprep.subr.bf16.mxu0 0
    %1927 = vmatpush2.bf16.msra.mxu0 %v1890
    %1928 = vmatprep.subr.bf16.mxu0 0
    %1929 = vmatpush2.bf16.msra.mxu0 %v1889
    %1930 = vmatprep.subr.bf16.mxu0 0
    %1931 = vmatpush2.bf16.msra.mxu0 %v1888
    %1932 = vmatprep.subr.bf16.mxu0 0
    %1933 = vmatpush2.bf16.msra.mxu0 %v1887
    %1934 = vmatprep.subr.bf16.mxu0 0
    %1935 = vmatpush2.bf16.msra.mxu0 %v1886
    %1936 = vmatprep.subr.bf16.mxu0 0
    %1937 = vmatpush2.bf16.msra.mxu0 %v1885
    %1938 = vmatprep.subr.bf16.mxu0 0
    %1939 = vmatpush2.bf16.msra.mxu0 %v1884
    %1940 = vmatprep.mubr.bf16.mxu0 %v1801
    %1941 = vmatmul.mubr.bf16.gmra.mxu0 %v1798
    %v1942 = vpop.f32.mrf.mxu0
    %v1943 = vadd.f32 0.0, %v1942
    %v1944 = vpop.f32.mrf.mxu0
    %v1945 = vpop.f32.mrf.mxu0
    %v1946 = vadd.f32 0.0, %v1945
    %v1947 = vpop.f32.mrf.mxu0
    %1948 = vmatprep.mubr.bf16.mxu0 %v1807
    %1949 = vmatmul.mubr.bf16.gmra.mxu0 %v1804
    %v1950 = vpop.f32.mrf.mxu0
    %v1951 = vadd.f32 0.0, %v1950
    %v1952 = vpop.f32.mrf.mxu0
    %v1953 = vpop.f32.mrf.mxu0
    %v1954 = vadd.f32 0.0, %v1953
    %v1955 = vpop.f32.mrf.mxu0
    %1956 = vdwg.mxu0
    %v1989 = vunpack.c.l.b16 %v166
    %v1990 = vunpack.c.l.b16 %v167
    %v1991 = vunpack.c.l.b16 %v168
    %v1992 = vunpack.c.l.b16 %v169
    %v1993 = vunpack.c.l.b16 %v170
    %v1994 = vunpack.c.l.b16 %v171
    %v1995 = vunpack.c.l.b16 %v172
    %v1996 = vunpack.c.l.b16 %v173
    %v1997 = vunpack.c.l.b16 %v174
    %v1998 = vunpack.c.l.b16 %v175
    %v1999 = vunpack.c.l.b16 %v176
    %v2000 = vunpack.c.l.b16 %v177
    %v2001 = vunpack.c.l.b16 %v178
    %v2002 = vunpack.c.l.b16 %v179
    %v2003 = vunpack.c.l.b16 %v180
    %v2004 = vunpack.c.l.b16 %v181
    %v2005 = vunpack.c.l.b16 %v182
    %v2006 = vunpack.c.l.b16 %v183
    %v2007 = vunpack.c.l.b16 %v184
    %v2008 = vunpack.c.l.b16 %v185
    %v2009 = vunpack.c.l.b16 %v186
    %v2010 = vunpack.c.l.b16 %v187
    %v2011 = vunpack.c.l.b16 %v188
    %v2012 = vunpack.c.l.b16 %v189
    %v2013 = vunpack.c.l.b16 %v190
    %v2014 = vunpack.c.l.b16 %v191
    %v2015 = vunpack.c.l.b16 %v192
    %v2016 = vunpack.c.l.b16 %v193
    %v2017 = vunpack.c.l.b16 %v194
    %v2018 = vunpack.c.l.b16 %v195
    %v2019 = vunpack.c.l.b16 %v196
    %v2020 = vunpack.c.l.b16 %v197
    %v2021 = vpack.c.b16 %v1990, %v1989
    %v2022 = vpack.c.b16 %v1992, %v1991
    %v2023 = vpack.c.b16 %v1994, %v1993
    %v2024 = vpack.c.b16 %v1996, %v1995
    %v2025 = vpack.c.b16 %v1998, %v1997
    %v2026 = vpack.c.b16 %v2000, %v1999
    %v2027 = vpack.c.b16 %v2002, %v2001
    %v2028 = vpack.c.b16 %v2004, %v2003
    %v2029 = vpack.c.b16 %v2006, %v2005
    %v2030 = vpack.c.b16 %v2008, %v2007
    %v2031 = vpack.c.b16 %v2010, %v2009
    %v2032 = vpack.c.b16 %v2012, %v2011
    %v2033 = vpack.c.b16 %v2014, %v2013
    %v2034 = vpack.c.b16 %v2016, %v2015
    %v2035 = vpack.c.b16 %v2018, %v2017
    %v2036 = vpack.c.b16 %v2020, %v2019
    %2053 = vmatprep.subr.bf16.mxu0 0
    %2054 = vmatpush1.bf16.msra.mxu0 %v2028
    %2055 = vmatprep.subr.bf16.mxu0 0
    %2056 = vmatpush1.bf16.msra.mxu0 %v2027
    %2057 = vmatprep.subr.bf16.mxu0 0
    %2058 = vmatpush1.bf16.msra.mxu0 %v2026
    %2059 = vmatprep.subr.bf16.mxu0 0
    %2060 = vmatpush1.bf16.msra.mxu0 %v2025
    %2061 = vmatprep.subr.bf16.mxu0 0
    %2062 = vmatpush1.bf16.msra.mxu0 %v2024
    %2063 = vmatprep.subr.bf16.mxu0 0
    %2064 = vmatpush1.bf16.msra.mxu0 %v2023
    %2065 = vmatprep.subr.bf16.mxu0 0
    %2066 = vmatpush1.bf16.msra.mxu0 %v2022
    %2067 = vmatprep.subr.bf16.mxu0 0
    %2068 = vmatpush1.bf16.msra.mxu0 %v2021
    %2069 = vmatprep.subr.bf16.mxu0 0
    %2070 = vmatpush2.bf16.msra.mxu0 %v2036
    %2071 = vmatprep.subr.bf16.mxu0 0
    %2072 = vmatpush2.bf16.msra.mxu0 %v2035
    %2073 = vmatprep.subr.bf16.mxu0 0
    %2074 = vmatpush2.bf16.msra.mxu0 %v2034
    %2075 = vmatprep.subr.bf16.mxu0 0
    %2076 = vmatpush2.bf16.msra.mxu0 %v2033
    %2077 = vmatprep.subr.bf16.mxu0 0
    %2078 = vmatpush2.bf16.msra.mxu0 %v2032
    %2079 = vmatprep.subr.bf16.mxu0 0
    %2080 = vmatpush2.bf16.msra.mxu0 %v2031
    %2081 = vmatprep.subr.bf16.mxu0 0
    %2082 = vmatpush2.bf16.msra.mxu0 %v2030
    %2083 = vmatprep.subr.bf16.mxu0 0
    %2084 = vmatpush2.bf16.msra.mxu0 %v2029
    %2085 = vmatprep.mubr.bf16.mxu0 %v1753
    %2086 = vmatmul.mubr.bf16.gmra.mxu0 %v1738
    %v2087 = vpop.f32.mrf.mxu0
    %v2088 = vadd.f32 %v1943, %v2087
    %v2089 = vpop.f32.mrf.mxu0
    %v2090 = vpop.f32.mrf.mxu0
    %v2091 = vadd.f32 %v1946, %v2090
    %v2092 = vpop.f32.mrf.mxu0
    %2093 = vmatprep.mubr.bf16.mxu0 %v1783
    %2094 = vmatmul.mubr.bf16.gmra.mxu0 %v1768
    %v2095 = vpop.f32.mrf.mxu0
    %v2096 = vadd.f32 %v1951, %v2095
    %v2097 = vpop.f32.mrf.mxu0
    %v2098 = vpop.f32.mrf.mxu0
    %v2099 = vadd.f32 %v1954, %v2098
    %v2100 = vpop.f32.mrf.mxu0
    %2101 = vdwg.mxu0
    %v2102 = vrot.slane %v1724, 4
    %v2103 = vrot.slane %v1727, 5
    %v2104 = vor.u32 %v2102, %v2103
    %v2105 = vrot.slane %v1731, 4
    %v2106 = vrot.slane %v1734, 5
    %v2107 = vor.u32 %v2105, %v2106
    %v2108 = vsel %vm609, %v2104, %v2107
    %v2109 = vrot.slane %v1739, 4
    %v2110 = vrot.slane %v1742, 5
    %v2111 = vor.u32 %v2109, %v2110
    %v2112 = vrot.slane %v1746, 4
    %v2113 = vrot.slane %v1749, 5
    %v2114 = vor.u32 %v2112, %v2113
    %v2115 = vsel %vm609, %v2111, %v2114
    %v2116 = vrot.slane %v1754, 4
    %v2117 = vrot.slane %v1757, 5
    %v2118 = vor.u32 %v2116, %v2117
    %v2119 = vrot.slane %v1761, 4
    %v2120 = vrot.slane %v1764, 5
    %v2121 = vor.u32 %v2119, %v2120
    %v2122 = vsel %vm609, %v2118, %v2121
    %v2123 = vrot.slane %v1769, 4
    %v2124 = vrot.slane %v1772, 5
    %v2125 = vor.u32 %v2123, %v2124
    %v2126 = vrot.slane %v1776, 4
    %v2127 = vrot.slane %v1779, 5
    %v2128 = vor.u32 %v2126, %v2127
    %v2129 = vsel %vm609, %v2125, %v2128
    %v2166 = vunpack.c.l.b16 %v230
    %v2167 = vunpack.c.l.b16 %v231
    %v2168 = vunpack.c.l.b16 %v232
    %v2169 = vunpack.c.l.b16 %v233
    %v2170 = vunpack.c.l.b16 %v234
    %v2171 = vunpack.c.l.b16 %v235
    %v2172 = vunpack.c.l.b16 %v236
    %v2173 = vunpack.c.l.b16 %v237
    %v2174 = vunpack.c.l.b16 %v238
    %v2175 = vunpack.c.l.b16 %v239
    %v2176 = vunpack.c.l.b16 %v240
    %v2177 = vunpack.c.l.b16 %v241
    %v2178 = vunpack.c.l.b16 %v242
    %v2179 = vunpack.c.l.b16 %v243
    %v2180 = vunpack.c.l.b16 %v244
    %v2181 = vunpack.c.l.b16 %v245
    %v2182 = vunpack.c.l.b16 %v246
    %v2183 = vunpack.c.l.b16 %v247
    %v2184 = vunpack.c.l.b16 %v248
    %v2185 = vunpack.c.l.b16 %v249
    %v2186 = vunpack.c.l.b16 %v250
    %v2187 = vunpack.c.l.b16 %v251
    %v2188 = vunpack.c.l.b16 %v252
    %v2189 = vunpack.c.l.b16 %v253
    %v2190 = vunpack.c.l.b16 %v254
    %v2191 = vunpack.c.l.b16 %v255
    %v2192 = vunpack.c.l.b16 %v256
    %v2193 = vunpack.c.l.b16 %v257
    %v2194 = vunpack.c.l.b16 %v258
    %v2195 = vunpack.c.l.b16 %v259
    %v2196 = vunpack.c.l.b16 %v260
    %v2197 = vunpack.c.l.b16 %v261
    %v2198 = vpack.c.b16 %v2167, %v2166
    %v2199 = vpack.c.b16 %v2169, %v2168
    %v2200 = vpack.c.b16 %v2171, %v2170
    %v2201 = vpack.c.b16 %v2173, %v2172
    %v2202 = vpack.c.b16 %v2175, %v2174
    %v2203 = vpack.c.b16 %v2177, %v2176
    %v2204 = vpack.c.b16 %v2179, %v2178
    %v2205 = vpack.c.b16 %v2181, %v2180
    %v2206 = vpack.c.b16 %v2183, %v2182
    %v2207 = vpack.c.b16 %v2185, %v2184
    %v2208 = vpack.c.b16 %v2187, %v2186
    %v2209 = vpack.c.b16 %v2189, %v2188
    %v2210 = vpack.c.b16 %v2191, %v2190
    %v2211 = vpack.c.b16 %v2193, %v2192
    %v2212 = vpack.c.b16 %v2195, %v2194
    %v2213 = vpack.c.b16 %v2197, %v2196
    %2230 = vmatprep.subr.bf16.mxu0 0
    %2231 = vmatpush1.bf16.msra.mxu0 %v2205
    %2232 = vmatprep.subr.bf16.mxu0 0
    %2233 = vmatpush1.bf16.msra.mxu0 %v2204
    %2234 = vmatprep.subr.bf16.mxu0 0
    %2235 = vmatpush1.bf16.msra.mxu0 %v2203
    %2236 = vmatprep.subr.bf16.mxu0 0
    %2237 = vmatpush1.bf16.msra.mxu0 %v2202
    %2238 = vmatprep.subr.bf16.mxu0 0
    %2239 = vmatpush1.bf16.msra.mxu0 %v2201
    %2240 = vmatprep.subr.bf16.mxu0 0
    %2241 = vmatpush1.bf16.msra.mxu0 %v2200
    %2242 = vmatprep.subr.bf16.mxu0 0
    %2243 = vmatpush1.bf16.msra.mxu0 %v2199
    %2244 = vmatprep.subr.bf16.mxu0 0
    %2245 = vmatpush1.bf16.msra.mxu0 %v2198
    %2246 = vmatprep.subr.bf16.mxu0 0
    %2247 = vmatpush2.bf16.msra.mxu0 %v2213
    %2248 = vmatprep.subr.bf16.mxu0 0
    %2249 = vmatpush2.bf16.msra.mxu0 %v2212
    %2250 = vmatprep.subr.bf16.mxu0 0
    %2251 = vmatpush2.bf16.msra.mxu0 %v2211
    %2252 = vmatprep.subr.bf16.mxu0 0
    %2253 = vmatpush2.bf16.msra.mxu0 %v2210
    %2254 = vmatprep.subr.bf16.mxu0 0
    %2255 = vmatpush2.bf16.msra.mxu0 %v2209
    %2256 = vmatprep.subr.bf16.mxu0 0
    %2257 = vmatpush2.bf16.msra.mxu0 %v2208
    %2258 = vmatprep.subr.bf16.mxu0 0
    %2259 = vmatpush2.bf16.msra.mxu0 %v2207
    %2260 = vmatprep.subr.bf16.mxu0 0
    %2261 = vmatpush2.bf16.msra.mxu0 %v2206
    %2262 = vmatprep.mubr.bf16.mxu0 %v2115
    %2263 = vmatmul.mubr.bf16.gmra.mxu0 %v2108
    %v2264 = vpop.f32.mrf.mxu0
    %v2265 = vadd.f32 0.0, %v2264
    %v2266 = vpop.f32.mrf.mxu0
    %v2267 = vpop.f32.mrf.mxu0
    %v2268 = vadd.f32 0.0, %v2267
    %v2269 = vpop.f32.mrf.mxu0
    %2270 = vmatprep.mubr.bf16.mxu0 %v2129
    %2271 = vmatmul.mubr.bf16.gmra.mxu0 %v2122
    %v2272 = vpop.f32.mrf.mxu0
    %v2273 = vadd.f32 0.0, %v2272
    %v2274 = vpop.f32.mrf.mxu0
    %v2275 = vpop.f32.mrf.mxu0
    %v2276 = vadd.f32 0.0, %v2275
    %v2277 = vpop.f32.mrf.mxu0
    %2278 = vdwg.mxu0
    %v2279 = vadd.f32 %v2088, %v2265
    %v2280 = vadd.f32 %v2091, %v2268
    %v2281 = vadd.f32 %v2096, %v2273
    %v2282 = vadd.f32 %v2099, %v2276
    %v2283 = vadd.f32 %v2279, %v2280
    %v2284 = vadd.f32 %v2283, %v2281
    %v2285 = vadd.f32 %v2284, %v2282
    %v2286 = vrot.slane %v2285, 4
    %v2287 = vadd.f32 %v2285, %v2286
    %v2288 = vrot.slane %v2287, 2
    %v2289 = vadd.f32 %v2287, %v2288
    %v2290 = vrot.slane %v2289, 1
    %v2291 = vadd.f32 %v2289, %v2290
    %v2292 = vmul.f32 %v2279, %v2279
    %v2293 = vmul.f32 %v2280, %v2280
    %v2294 = vmul.f32 %v2281, %v2281
    %v2295 = vmul.f32 %v2282, %v2282
    %v2296 = vadd.f32 %v2292, %v2293
    %v2297 = vadd.f32 %v2296, %v2294
    %v2298 = vadd.f32 %v2297, %v2295
    %v2299 = vrot.slane %v2298, 4
    %v2300 = vadd.f32 %v2298, %v2299
    %v2301 = vrot.slane %v2300, 2
    %v2302 = vadd.f32 %v2300, %v2301
    %v2303 = vrot.slane %v2302, 1
    %v2304 = vadd.f32 %v2302, %v2303
    %v2305 = vmul.f32 %v2291, 0.03125
    %v2306 = vmul.f32 %v2304, 0.03125
    %v2307 = vmul.f32 %v2305, %v2305
    %v2308 = vsub.f32 %v2306, %v2307
    %v2309 = vadd.f32 %v2308, 1e-05
    %v2310 = vrsqrt.pop %v2309
    %v2311 = vmul.f32 %v262, %v2310
    %v2312 = vmul.f32 %v2305, %v2311
    %v2313 = vsub.f32 %v263, %v2312
    %v2315 = vlaneseq
    %v2316 = vshrl.u32 %v2315, 7
    %v2317 = vsub.s32 0, %v2316
    %v2318 = vrot.slane %v2311, %v2317
    %v2320 = vmul.f32 %v2279, %v2318
    %v2321 = vmul.f32 %v2280, %v2318
    %v2322 = vmul.f32 %v2281, %v2318
    %v2323 = vmul.f32 %v2282, %v2318
    %v2325 = vlaneseq
    %v2326 = vshrl.u32 %v2325, 7
    %v2327 = vsub.s32 0, %v2326
    %v2328 = vrot.slane %v2313, %v2327
    %v2330 = vadd.f32 %v2320, %v2328
    %v2331 = vadd.f32 %v2321, %v2328
    %v2332 = vadd.f32 %v2322, %v2328
    %v2333 = vadd.f32 %v2323, %v2328
    %v2334 = vmax.f32 %v2330, 0.0
    %v2335 = vmax.f32 %v2331, 0.0
    %v2336 = vmax.f32 %v2332, 0.0
    %v2337 = vmax.f32 %v2333, 0.0
    %v2338 = vpack.c.bf16 %v2335, %v2334
    %v2339 = vpack.c.bf16 %v2337, %v2336
    %v2340 = vunpack.c.l.bf16 %v2338
    %v2341 = vunpack.c.h.bf16 %v2338
    %v2342 = vunpack.c.l.bf16 %v2339
    %v2343 = vunpack.c.h.bf16 %v2339
    %v2344 = vadd.f32 %v2340, %v2341
    %v2345 = vrot.slane %v2344, 4
    %v2346 = vadd.f32 %v2344, %v2345
    %v2347 = vrot.slane %v2346, 2
    %v2348 = vadd.f32 %v2346, %v2347
    %v2349 = vrot.slane %v2348, 1
    %v2350 = vadd.f32 %v2348, %v2349
    %v2351 = vadd.f32 %v2342, %v2343
    %v2352 = vrot.slane %v2351, 4
    %v2353 = vadd.f32 %v2351, %v2352
    %v2354 = vrot.slane %v2353, 2
    %v2355 = vadd.f32 %v2353, %v2354
    %v2356 = vrot.slane %v2355, 1
    %v2357 = vadd.f32 %v2355, %v2356
    %v2358 = vrcp.pop 16.0
    %v2359 = vmul.f32 %v2350, %v2358
    %v2360 = vmul.f32 %v2357, %v2358
    %v2361 = vpack.c.bf16 %v2359, %v2359
    %v2362 = vpack.c.bf16 %v2360, %v2360
    %v2364 = vlaneseq
    %v2365 = vshrl.u32 %v2364, 7
    %v2366 = vsub.s32 0, %v2365
    %v2367 = vrot.slane %v280, %v2366
    %v2371 = vunpack.c.l.b16 %v2361
    %v2372 = vunpack.c.l.b16 %v2362
    %vm2373 = vcmask 1041409
    %v2374 = vsel %vm2373, %v2372, %v2371
    %v2375 = vpack.c.b16 %v2374, %v2374
    %v2393 = vunpack.c.l.b16 %v264
    %v2394 = vunpack.c.l.b16 %v265
    %v2395 = vunpack.c.l.b16 %v266
    %v2396 = vunpack.c.l.b16 %v267
    %v2397 = vunpack.c.l.b16 %v268
    %v2398 = vunpack.c.l.b16 %v269
    %v2399 = vunpack.c.l.b16 %v270
    %v2400 = vunpack.c.l.b16 %v271
    %v2401 = vunpack.c.l.b16 %v272
    %v2402 = vunpack.c.l.b16 %v273
    %v2403 = vunpack.c.l.b16 %v274
    %v2404 = vunpack.c.l.b16 %v275
    %v2405 = vunpack.c.l.b16 %v276
    %v2406 = vunpack.c.l.b16 %v277
    %v2407 = vunpack.c.l.b16 %v278
    %v2408 = vunpack.c.l.b16 %v279
    %v2409 = vpack.c.b16 %v2394, %v2393
    %v2410 = vpack.c.b16 %v2396, %v2395
    %v2411 = vpack.c.b16 %v2398, %v2397
    %v2412 = vpack.c.b16 %v2400, %v2399
    %v2413 = vpack.c.b16 %v2402, %v2401
    %v2414 = vpack.c.b16 %v2404, %v2403
    %v2415 = vpack.c.b16 %v2406, %v2405
    %v2416 = vpack.c.b16 %v2408, %v2407
    %2425 = vmatprep.subr.bf16.mxu0 0
    %2426 = vmatpush1.bf16.msra.mxu0 %v2416
    %2427 = vmatprep.subr.bf16.mxu0 0
    %2428 = vmatpush1.bf16.msra.mxu0 %v2415
    %2429 = vmatprep.subr.bf16.mxu0 0
    %2430 = vmatpush1.bf16.msra.mxu0 %v2414
    %2431 = vmatprep.subr.bf16.mxu0 0
    %2432 = vmatpush1.bf16.msra.mxu0 %v2413
    %2433 = vmatprep.subr.bf16.mxu0 0
    %2434 = vmatpush1.bf16.msra.mxu0 %v2412
    %2435 = vmatprep.subr.bf16.mxu0 0
    %2436 = vmatpush1.bf16.msra.mxu0 %v2411
    %2437 = vmatprep.subr.bf16.mxu0 0
    %2438 = vmatpush1.bf16.msra.mxu0 %v2410
    %2439 = vmatprep.subr.bf16.mxu0 0
    %2440 = vmatpush1.bf16.msra.mxu0 %v2409
    %2441 = vmatprep.subr.bf16.mxu0 0
    %2442 = vmatpush2.bf16.msra.mxu0 0
    %2443 = vmatprep.subr.bf16.mxu0 0
    %2444 = vmatpush2.bf16.msra.mxu0 0
    %2445 = vmatprep.subr.bf16.mxu0 0
    %2446 = vmatpush2.bf16.msra.mxu0 0
    %2447 = vmatprep.subr.bf16.mxu0 0
    %2448 = vmatpush2.bf16.msra.mxu0 0
    %2449 = vmatprep.subr.bf16.mxu0 0
    %2450 = vmatpush2.bf16.msra.mxu0 0
    %2451 = vmatprep.subr.bf16.mxu0 0
    %2452 = vmatpush2.bf16.msra.mxu0 0
    %2453 = vmatprep.subr.bf16.mxu0 0
    %2454 = vmatpush2.bf16.msra.mxu0 0
    %2455 = vmatprep.subr.bf16.mxu0 0
    %2456 = vmatpush2.bf16.msra.mxu0 0
    %2457 = vmatprep.mubr.bf16.mxu0 0
    %2458 = vmatmul.mubr.bf16.gmra.mxu0 %v2375
    %v2459 = vpop.f32.mrf.mxu0
    %v2460 = vadd.f32 %v2367, %v2459
    %v2461 = vpop.f32.mrf.mxu0
    %v2462 = vpop.f32.mrf.mxu0
    %v2463 = vpop.f32.mrf.mxu0
    %2464 = vdwg.mxu0
    %vm2465 = vcmask 33792
    %2466 = vst.msk [vmem:[#allocation7] sm:$0x3] %vm2465, %v2460
    // Predicated region
    $region58: #{tpu_custom_call.1} parent=1 // pred_check
      _
    $region59: #{tpu_custom_call.1} parent=1 // pred_check_branch
      %2468 = sbr.rel (0) target = $region61
    $region60: #{tpu_custom_call.1} parent=1 // pred_region
      %s2470 = ssub.s32 32, 32
      %2471 = vsyncadd [#allocation4], %s2470
      %s2473 = sshll.u32 [#allocation7], 4
      %s2474 = int_to_ptr.vmem [resolvable:$true] %s2473
      %2476 = dma.vmem_to_hbm [thread:$0]  %s2474, 32, %s12, [#allocation4]
    $region61: #{tpu_custom_call.1} parent=1 // pred_fallthru
      _
    // Predicated region
    $region62: #{tpu_custom_call.1} parent=1 // pred_check
      _
    $region63: #{tpu_custom_call.1} parent=1 // pred_check_branch
      %2478 = sbr.rel (0) target = $region65
    $region64: #{tpu_custom_call.1} parent=1 // pred_region
      %2479 = dma.done [#allocation4], 32
    $region65: #{tpu_custom_call.1} parent=1 // pred_fallthru
      _
    %2480 = vsyncpa [#allocation3], 1
    %2481 = vsyncpa [#allocation6], 1
    %2482 = vsyncpa [#allocation4], 1

</llo_original>
